<compile_context>
chip_gen: v6e
topology: v6e:2x2x1
jax: 0.10.0
libtpu: 0.0.40
codegen_flags: <defaults>
</compile_context>

<pallas_src>
import jax
import jax.numpy as jnp
import numpy as np
from jax.experimental import pallas as pl
from jax.experimental.pallas import tpu as pltpu


def _mesh_reader_kernel(a_ref, x_ref, w_ref, gamma_ref, beta_ref, alpha_ref,
                        w1_ref, b1_ref, w2_ref, b2_ref, o_ref):
    Bt, N, _ = a_ref.shape
    Fin = x_ref.shape[2]
    H = w_ref.shape[1]

    a = a_ref[...].astype(jnp.float32)        # [Bt, N, N]
    x = x_ref[...].astype(jnp.float32)        # [Bt, N, Fin]

    # --- GraphConv (norm='both', bias=False, edge_weight on messages) ---
    # DGL uses unweighted structural in/out degrees for the norm, clamp(min=1).
    adj = (a != 0.0).astype(jnp.float32)
    deg_in = jnp.sum(adj, axis=2, keepdims=True)            # [Bt, N, 1]  dst side
    deg_out = jnp.sum(adj, axis=1, keepdims=True)           # [Bt, 1, N]  src side
    inv_in = jax.lax.rsqrt(jnp.maximum(deg_in, 1.0))
    inv_out = jax.lax.rsqrt(jnp.maximum(deg_out, 1.0))
    # Fold both norms into the adjacency: pure sublane/lane broadcast multiplies.
    a_norm = a * inv_in * inv_out                           # [Bt, N, N]

    m = jnp.einsum("bij,bjf->bif", a_norm, x,
                   preferred_element_type=jnp.float32)      # [Bt, N, Fin]

    # Shared-weight projection as one big matmul over the flattened batch.
    h = jnp.dot(m.reshape(Bt * N, Fin), w_ref[...],
                preferred_element_type=jnp.float32)         # [Bt*N, H]

    # --- LeakyReLU(0.01) on the flat slab ---
    h = jnp.where(h > 0, h, 0.01 * h)

    # --- GraphNorm(hidden, eps=1e-5): per-graph / per-feature over nodes ---
    h3 = h.reshape(Bt, N, H)
    mean = jnp.mean(h3, axis=1, keepdims=True)              # [Bt, 1, H]
    centered = h3 - alpha_ref[...] * mean                   # learnable mean-scale
    var = jnp.mean(centered * centered, axis=1, keepdims=True)
    hn = centered * jax.lax.rsqrt(var + 1e-5)
    hn = hn * gamma_ref[...] + beta_ref[...]                # [Bt, N, H]

    # --- graph readout: mean / max / min over nodes (sublane-axis reductions) ---
    r_mean = jnp.mean(hn, axis=1)                           # [Bt, H]
    r_max = jnp.max(hn, axis=1)                             # [Bt, H]
    r_min = jnp.min(hn, axis=1)                             # [Bt, H]

    # --- GenericMLP: Linear(3H, M) -> ReLU -> Linear(M, O) ---
    # hstack realized as three slab-matmuls against W1 (mathematically identical,
    # avoids a lane-dim concatenate on TPU).
    z = (jnp.dot(r_mean, w1_ref[0:H, :], preferred_element_type=jnp.float32)
         + jnp.dot(r_max, w1_ref[H:2 * H, :], preferred_element_type=jnp.float32)
         + jnp.dot(r_min, w1_ref[2 * H:3 * H, :], preferred_element_type=jnp.float32)
         + b1_ref[...])                                     # [Bt, M]
    z = jnp.maximum(z, 0.0)
    o = jnp.dot(z, w2_ref[...], preferred_element_type=jnp.float32) + b2_ref[...]  # [Bt, O]

    # Lane-dense store: graphs on the lane axis, logits on the sublane axis.
    o_ref[0] = o.T.astype(o_ref.dtype)                      # [O, Bt]


def _choose_bt(B, N, Fin, itemsize):
    """Graphs per grid step: amortize per-step overhead, keep >=2 grid steps when
    possible (v7x megacore), and stay under a double-buffered VMEM budget."""
    if B <= 1:
        bt = 1
    else:
        bt = min(128, pl.cdiv(B, 2))
    per_graph_bytes = (N * N + N * Fin) * itemsize
    vmem_budget = 24 * 1024 * 1024          # headroom under v7x's 32 MiB scoped default
    max_bt = max(1, vmem_budget // (2 * per_graph_bytes))   # 2x for double-buffering
    return int(max(1, min(bt, max_bt)))


def spiral_mesh_reader(a, x, params, *, use_bf16_inputs=False):
    """a: [B, N, N] weighted adjacency; x: [B, N, Fin]; params: dict of weights."""
    B, N, Fin = x.shape
    w, gamma, beta, alpha = params["w"], params["gamma"], params["beta"], params["alpha"]
    w1, b1, w2, b2 = params["w1"], params["b1"], params["w2"], params["b2"]
    H = w.shape[1]
    M = w1.shape[1]
    O = w2.shape[1]

    # Optional: halve the HBM traffic on the N^2 adjacency stream for large N
    # (dots keep preferred_element_type=f32, so accumulation stays f32).
    in_dtype = jnp.bfloat16 if use_bf16_inputs else jnp.float32
    a = a.astype(in_dtype)
    x = x.astype(in_dtype)

    bt = _choose_bt(B, N, Fin, jnp.dtype(in_dtype).itemsize)
    G = pl.cdiv(B, bt)
    B_pad = G * bt
    if B_pad != B:
        pad = B_pad - B
        # Zero-padded graphs are harmless (degree clamp -> finite math), sliced off below.
        a = jnp.pad(a, ((0, pad), (0, 0), (0, 0)))
        x = jnp.pad(x, ((0, pad), (0, 0), (0, 0)))

    grid_spec = pltpu.PrefetchScalarGridSpec(
        num_scalar_prefetch=0,
        grid=(G,),
        in_specs=[
            pl.BlockSpec((bt, N, N), lambda g: (g, 0, 0)),     # adjacency, Bt graphs/step
            pl.BlockSpec((bt, N, Fin), lambda g: (g, 0, 0)),   # node feats, Bt graphs/step
            pl.BlockSpec((Fin, H), lambda g: (0, 0)),          # GraphConv weight (resident)
            pl.BlockSpec((1, H), lambda g: (0, 0)),            # GraphNorm gamma
            pl.BlockSpec((1, H), lambda g: (0, 0)),            # GraphNorm beta
            pl.BlockSpec((1, H), lambda g: (0, 0)),            # GraphNorm mean-scale alpha
            pl.BlockSpec((3 * H, M), lambda g: (0, 0)),        # MLP W1
            pl.BlockSpec((1, M), lambda g: (0, 0)),            # MLP b1
            pl.BlockSpec((M, O), lambda g: (0, 0)),            # MLP W2
            pl.BlockSpec((1, O), lambda g: (0, 0)),            # MLP b2
        ],
        # Transposed output block [O, Bt]: graphs on the lane axis (lane-dense store).
        out_specs=pl.BlockSpec((1, O, bt), lambda g: (g, 0, 0)),
    )

    out_t = pl.pallas_call(
        _mesh_reader_kernel,
        out_shape=jax.ShapeDtypeStruct((G, O, bt), jnp.float32),
        grid_spec=grid_spec,
        compiler_params=pltpu.CompilerParams(dimension_semantics=("parallel",)),
    )(a, x, w, gamma, beta, alpha, w1, b1, w2, b2)

    # [G, O, bt] -> [G, bt, O] -> [B_pad, O] -> [B, O]
    out = jnp.swapaxes(out_t, 1, 2).reshape(B_pad, O)[:B]
    return out


def _reference(a, x, params):
    """Pure-JAX reference for validation."""
    w, gamma, beta, alpha = params["w"], params["gamma"], params["beta"], params["alpha"]
    w1, b1, w2, b2 = params["w1"], params["b1"], params["w2"], params["b2"]
    adj = (a != 0.0).astype(jnp.float32)
    deg_in = jnp.sum(adj, axis=2, keepdims=True)
    deg_out = jnp.sum(adj, axis=1, keepdims=True)
    a_norm = (a / jnp.sqrt(jnp.maximum(deg_in, 1.0))
                / jnp.sqrt(jnp.maximum(deg_out, 1.0)))
    h = jnp.einsum("bij,bjf->bif", a_norm, x)
    h = jnp.einsum("bif,fh->bih", h, w)
    h = jnp.where(h > 0, h, 0.01 * h)
    mean = jnp.mean(h, axis=1, keepdims=True)
    centered = h - alpha[None] * mean
    var = jnp.mean(centered ** 2, axis=1, keepdims=True)
    hn = centered / jnp.sqrt(var + 1e-5) * gamma[None] + beta[None]
    r = jnp.concatenate([jnp.mean(hn, axis=1), jnp.max(hn, axis=1), jnp.min(hn, axis=1)],
                        axis=1)
    z = jnp.maximum(r @ w1 + b1, 0.0)
    return z @ w2 + b2


if __name__ == "__main__":
    B, N = 8, 16
    in_dim, hidden_dim, mlp_hidden_dim, out_dim = 8, 16, 32, 4

    key = jax.random.PRNGKey(0)
    k_x, k_a, k_ew, k_w, k_w1, k_b1, k_w2, k_b2 = jax.random.split(key, 8)

    # Node features
    x = jax.random.normal(k_x, (B, N, in_dim), dtype=jnp.float32)

    # Random (asymmetric) sparse adjacency with positive edge weights, zero diagonal,
    # to exercise the in/out-degree handling of norm='both'.
    mask = (jax.random.uniform(k_a, (B, N, N)) < 0.3).astype(jnp.float32)
    mask = mask * (1.0 - jnp.eye(N)[None])
    weights = jax.random.uniform(k_ew, (B, N, N), minval=0.5, maxval=1.5)
    a = mask * weights

    # Deterministic parameters (synthetic; no checkpoint load).
    params = {
        "w": jax.random.normal(k_w, (in_dim, hidden_dim), dtype=jnp.float32)
             * (1.0 / np.sqrt(in_dim)),
        "gamma": jnp.ones((1, hidden_dim), dtype=jnp.float32),
        "beta": jnp.zeros((1, hidden_dim), dtype=jnp.float32),
        "alpha": jnp.ones((1, hidden_dim), dtype=jnp.float32),   # GraphNorm mean-scale
        "w1": jax.random.normal(k_w1, (3 * hidden_dim, mlp_hidden_dim), dtype=jnp.float32)
              * (1.0 / np.sqrt(3 * hidden_dim)),
        "b1": jax.random.normal(k_b1, (1, mlp_hidden_dim), dtype=jnp.float32) * 0.01,
        "w2": jax.random.normal(k_w2, (mlp_hidden_dim, out_dim), dtype=jnp.float32)
              * (1.0 / np.sqrt(mlp_hidden_dim)),
        "b2": jax.random.normal(k_b2, (1, out_dim), dtype=jnp.float32) * 0.01,
    }

    out = spiral_mesh_reader(a, x, params)
    out = jax.block_until_ready(out)

    ref = jax.block_until_ready(_reference(a, x, params))
    np.testing.assert_allclose(np.asarray(out), np.asarray(ref), rtol=1e-4, atol=1e-4)

    # GraphNormConv2 is defined in __init__ but never used in forward -> intentionally omitted.
    print("KERNEL_OK")
</pallas_src>

<mosaic_0001>
module attributes {stable_mosaic.version = 11 : i64} {
  func.func @_mesh_reader_kernel(%arg0: i32, %arg1: memref<4x16x16xf32, #tpu.memory_space<vmem>>, %arg2: memref<4x16x8xf32, #tpu.memory_space<vmem>>, %arg3: memref<8x16xf32, #tpu.memory_space<vmem>>, %arg4: memref<1x16xf32, #tpu.memory_space<vmem>>, %arg5: memref<1x16xf32, #tpu.memory_space<vmem>>, %arg6: memref<1x16xf32, #tpu.memory_space<vmem>>, %arg7: memref<48x32xf32, #tpu.memory_space<vmem>>, %arg8: memref<1x32xf32, #tpu.memory_space<vmem>>, %arg9: memref<32x4xf32, #tpu.memory_space<vmem>>, %arg10: memref<1x4xf32, #tpu.memory_space<vmem>>, %arg11: memref<1x4x4xf32, #tpu.memory_space<vmem>>) attributes {dimension_semantics = [#tpu.dimension_semantics<parallel>], iteration_bounds = array<i64: 2>, scalar_prefetch = 0 : i64, scratch_operands = 0 : i64, tpu.core_type = #tpu.core_type<tc>, window_params = [{transform_indices = @transform_0, window_bounds = array<i64: 4, 16, 16>}, {transform_indices = @transform_1, window_bounds = array<i64: 4, 16, 8>}, {pipeline_mode = #tpu.pipeline_mode<synchronous>, transform_indices = @transform_2, window_bounds = array<i64: 8, 16>}, {pipeline_mode = #tpu.pipeline_mode<synchronous>, transform_indices = @transform_3, window_bounds = array<i64: 1, 16>}, {pipeline_mode = #tpu.pipeline_mode<synchronous>, transform_indices = @transform_4, window_bounds = array<i64: 1, 16>}, {pipeline_mode = #tpu.pipeline_mode<synchronous>, transform_indices = @transform_5, window_bounds = array<i64: 1, 16>}, {pipeline_mode = #tpu.pipeline_mode<synchronous>, transform_indices = @transform_6, window_bounds = array<i64: 48, 32>}, {pipeline_mode = #tpu.pipeline_mode<synchronous>, transform_indices = @transform_7, window_bounds = array<i64: 1, 32>}, {pipeline_mode = #tpu.pipeline_mode<synchronous>, transform_indices = @transform_8, window_bounds = array<i64: 32, 4>}, {pipeline_mode = #tpu.pipeline_mode<synchronous>, transform_indices = @transform_9, window_bounds = array<i64: 1, 4>}, {transform_indices = @transform_10, window_bounds = array<i64: 1, 4, 4>}]} {
    %c0 = arith.constant 0 : index
    %c0_0 = arith.constant 0 : index
    %c0_1 = arith.constant 0 : index
    %0 = vector.load %arg1[%c0, %c0_0, %c0_1] : memref<4x16x16xf32, #tpu.memory_space<vmem>>, vector<4x16x16xf32>
    %c0_2 = arith.constant 0 : index
    %c0_3 = arith.constant 0 : index
    %c0_4 = arith.constant 0 : index
    %1 = vector.load %arg2[%c0_2, %c0_3, %c0_4] : memref<4x16x8xf32, #tpu.memory_space<vmem>>, vector<4x16x8xf32>
    %cst = arith.constant 0.000000e+00 : f32
    %2 = vector.broadcast %cst : f32 to vector<4x16x16xf32>
    %3 = arith.cmpf one, %0, %2 : vector<4x16x16xf32>
    %4 = arith.extui %3 : vector<4x16x16xi1> to vector<4x16x16xi32>
    %5 = arith.sitofp %4 : vector<4x16x16xi32> to vector<4x16x16xf32>
    %cst_5 = arith.constant dense<0.000000e+00> : vector<4x16xf32>
    %6 = vector.multi_reduction <add>, %5, %cst_5 [2] : vector<4x16x16xf32> to vector<4x16xf32>
    %7 = vector.shape_cast %6 : vector<4x16xf32> to vector<4x16x1xf32>
    %cst_6 = arith.constant dense<0.000000e+00> : vector<4x16xf32>
    %8 = vector.multi_reduction <add>, %5, %cst_6 [1] : vector<4x16x16xf32> to vector<4x16xf32>
    %9 = vector.shape_cast %8 : vector<4x16xf32> to vector<4x1x16xf32>
    %cst_7 = arith.constant 1.000000e+00 : f32
    %10 = vector.broadcast %cst_7 : f32 to vector<4x16x1xf32>
    %11 = arith.maximumf %7, %10 : vector<4x16x1xf32>
    %12 = math.rsqrt %11 : vector<4x16x1xf32>
    %cst_8 = arith.constant 1.000000e+00 : f32
    %13 = vector.broadcast %cst_8 : f32 to vector<4x1x16xf32>
    %14 = arith.maximumf %9, %13 : vector<4x1x16xf32>
    %15 = math.rsqrt %14 : vector<4x1x16xf32>
    %16 = vector.broadcast %12 : vector<4x16x1xf32> to vector<4x16x16xf32>
    %17 = arith.mulf %0, %16 : vector<4x16x16xf32>
    %18 = vector.broadcast %15 : vector<4x1x16xf32> to vector<4x16x16xf32>
    %19 = arith.mulf %17, %18 : vector<4x16x16xf32>
    "tpu.trace_start"() <{level = 10 : i32, message = "bij,bjf->bif"}> : () -> ()
    %cst_9 = arith.constant dense<0.000000e+00> : vector<4x16x8xf32>
    %20 = tpu.matmul %19, %1, %cst_9 {dimension_numbers = #tpu.dot_dimension_numbers<[2], [1], [1], [2], [0, 0, 0, 1, 1, 2], [0], [0]>} : vector<4x16x16xf32>, vector<4x16x8xf32>, vector<4x16x8xf32> -> vector<4x16x8xf32>
    "tpu.trace_stop"() : () -> ()
    %21 = vector.shape_cast %20 : vector<4x16x8xf32> to vector<64x8xf32>
    %c0_10 = arith.constant 0 : index
    %c0_11 = arith.constant 0 : index
    %22 = vector.load %arg3[%c0_10, %c0_11] : memref<8x16xf32, #tpu.memory_space<vmem>>, vector<8x16xf32>
    %cst_12 = arith.constant dense<0.000000e+00> : vector<64x16xf32>
    %23 = tpu.matmul %21, %22, %cst_12 {dimension_numbers = #tpu.dot_dimension_numbers<[1], [0], [0], [1], [0, 0, 1, 1], [], []>} : vector<64x8xf32>, vector<8x16xf32>, vector<64x16xf32> -> vector<64x16xf32>
    %cst_13 = arith.constant 0.000000e+00 : f32
    %24 = vector.broadcast %cst_13 : f32 to vector<64x16xf32>
    %25 = arith.cmpf ogt, %23, %24 : vector<64x16xf32>
    %cst_14 = arith.constant 0.00999999977 : f32
    %26 = vector.broadcast %cst_14 : f32 to vector<64x16xf32>
    %27 = arith.mulf %26, %23 : vector<64x16xf32>
    %28 = arith.select %25, %23, %27 : vector<64x16xi1>, vector<64x16xf32>
    %29 = vector.shape_cast %28 : vector<64x16xf32> to vector<4x16x16xf32>
    %cst_15 = arith.constant dense<0.000000e+00> : vector<4x16xf32>
    %30 = vector.multi_reduction <add>, %29, %cst_15 [1] : vector<4x16x16xf32> to vector<4x16xf32>
    %31 = vector.shape_cast %30 : vector<4x16xf32> to vector<4x1x16xf32>
    %cst_16 = arith.constant 1.600000e+01 : f32
    %32 = vector.broadcast %cst_16 : f32 to vector<4x1x16xf32>
    %33 = arith.divf %31, %32 : vector<4x1x16xf32>
    %c0_17 = arith.constant 0 : index
    %c0_18 = arith.constant 0 : index
    %34 = vector.load %arg6[%c0_17, %c0_18] : memref<1x16xf32, #tpu.memory_space<vmem>>, vector<1x16xf32>
    %35 = vector.shape_cast %34 : vector<1x16xf32> to vector<1x1x16xf32>
    %36 = vector.broadcast %35 : vector<1x1x16xf32> to vector<4x1x16xf32>
    %37 = arith.mulf %36, %33 : vector<4x1x16xf32>
    %38 = vector.broadcast %37 : vector<4x1x16xf32> to vector<4x16x16xf32>
    %39 = arith.subf %29, %38 : vector<4x16x16xf32>
    %40 = arith.mulf %39, %39 : vector<4x16x16xf32>
    %cst_19 = arith.constant dense<0.000000e+00> : vector<4x16xf32>
    %41 = vector.multi_reduction <add>, %40, %cst_19 [1] : vector<4x16x16xf32> to vector<4x16xf32>
    %42 = vector.shape_cast %41 : vector<4x16xf32> to vector<4x1x16xf32>
    %cst_20 = arith.constant 1.600000e+01 : f32
    %43 = vector.broadcast %cst_20 : f32 to vector<4x1x16xf32>
    %44 = arith.divf %42, %43 : vector<4x1x16xf32>
    %cst_21 = arith.constant 9.99999974E-6 : f32
    %45 = vector.broadcast %cst_21 : f32 to vector<4x1x16xf32>
    %46 = arith.addf %44, %45 : vector<4x1x16xf32>
    %47 = math.rsqrt %46 : vector<4x1x16xf32>
    %48 = vector.broadcast %47 : vector<4x1x16xf32> to vector<4x16x16xf32>
    %49 = arith.mulf %39, %48 : vector<4x16x16xf32>
    %c0_22 = arith.constant 0 : index
    %c0_23 = arith.constant 0 : index
    %50 = vector.load %arg4[%c0_22, %c0_23] : memref<1x16xf32, #tpu.memory_space<vmem>>, vector<1x16xf32>
    %51 = vector.shape_cast %50 : vector<1x16xf32> to vector<1x1x16xf32>
    %52 = vector.broadcast %51 : vector<1x1x16xf32> to vector<4x16x16xf32>
    %53 = arith.mulf %49, %52 : vector<4x16x16xf32>
    %c0_24 = arith.constant 0 : index
    %c0_25 = arith.constant 0 : index
    %54 = vector.load %arg5[%c0_24, %c0_25] : memref<1x16xf32, #tpu.memory_space<vmem>>, vector<1x16xf32>
    %55 = vector.shape_cast %54 : vector<1x16xf32> to vector<1x1x16xf32>
    %56 = vector.broadcast %55 : vector<1x1x16xf32> to vector<4x16x16xf32>
    %57 = arith.addf %53, %56 : vector<4x16x16xf32>
    %cst_26 = arith.constant dense<0.000000e+00> : vector<4x16xf32>
    %58 = vector.multi_reduction <add>, %57, %cst_26 [1] : vector<4x16x16xf32> to vector<4x16xf32>
    %cst_27 = arith.constant 1.600000e+01 : f32
    %59 = vector.broadcast %cst_27 : f32 to vector<4x16xf32>
    %60 = arith.divf %58, %59 : vector<4x16xf32>
    %cst_28 = arith.constant dense<0xFF800000> : vector<4x16xf32>
    %61 = vector.multi_reduction <maximumf>, %57, %cst_28 [1] : vector<4x16x16xf32> to vector<4x16xf32>
    %cst_29 = arith.constant dense<0x7F800000> : vector<4x16xf32>
    %62 = vector.multi_reduction <minimumf>, %57, %cst_29 [1] : vector<4x16x16xf32> to vector<4x16xf32>
    %c0_30 = arith.constant 0 : index
    %c0_31 = arith.constant 0 : index
    %63 = vector.load %arg7[%c0_30, %c0_31] : memref<48x32xf32, #tpu.memory_space<vmem>>, vector<16x32xf32>
    %cst_32 = arith.constant dense<0.000000e+00> : vector<4x32xf32>
    %64 = tpu.matmul %60, %63, %cst_32 {dimension_numbers = #tpu.dot_dimension_numbers<[1], [0], [0], [1], [0, 0, 1, 1], [], []>} : vector<4x16xf32>, vector<16x32xf32>, vector<4x32xf32> -> vector<4x32xf32>
    %c16 = arith.constant 16 : index
    %c0_33 = arith.constant 0 : index
    %65 = vector.load %arg7[%c16, %c0_33] : memref<48x32xf32, #tpu.memory_space<vmem>>, vector<16x32xf32>
    %cst_34 = arith.constant dense<0.000000e+00> : vector<4x32xf32>
    %66 = tpu.matmul %61, %65, %cst_34 {dimension_numbers = #tpu.dot_dimension_numbers<[1], [0], [0], [1], [0, 0, 1, 1], [], []>} : vector<4x16xf32>, vector<16x32xf32>, vector<4x32xf32> -> vector<4x32xf32>
    %67 = arith.addf %64, %66 : vector<4x32xf32>
    %c32 = arith.constant 32 : index
    %c0_35 = arith.constant 0 : index
    %68 = vector.load %arg7[%c32, %c0_35] : memref<48x32xf32, #tpu.memory_space<vmem>>, vector<16x32xf32>
    %cst_36 = arith.constant dense<0.000000e+00> : vector<4x32xf32>
    %69 = tpu.matmul %62, %68, %cst_36 {dimension_numbers = #tpu.dot_dimension_numbers<[1], [0], [0], [1], [0, 0, 1, 1], [], []>} : vector<4x16xf32>, vector<16x32xf32>, vector<4x32xf32> -> vector<4x32xf32>
    %70 = arith.addf %67, %69 : vector<4x32xf32>
    %c0_37 = arith.constant 0 : index
    %c0_38 = arith.constant 0 : index
    %71 = vector.load %arg8[%c0_37, %c0_38] : memref<1x32xf32, #tpu.memory_space<vmem>>, vector<1x32xf32>
    %72 = vector.broadcast %71 : vector<1x32xf32> to vector<4x32xf32>
    %73 = arith.addf %70, %72 : vector<4x32xf32>
    %cst_39 = arith.constant 0.000000e+00 : f32
    %74 = vector.broadcast %cst_39 : f32 to vector<4x32xf32>
    %75 = arith.maximumf %73, %74 : vector<4x32xf32>
    %c0_40 = arith.constant 0 : index
    %c0_41 = arith.constant 0 : index
    %76 = vector.load %arg9[%c0_40, %c0_41] : memref<32x4xf32, #tpu.memory_space<vmem>>, vector<32x4xf32>
    %cst_42 = arith.constant dense<0.000000e+00> : vector<4x4xf32>
    %77 = tpu.matmul %75, %76, %cst_42 {dimension_numbers = #tpu.dot_dimension_numbers<[1], [0], [0], [1], [0, 0, 1, 1], [], []>} : vector<4x32xf32>, vector<32x4xf32>, vector<4x4xf32> -> vector<4x4xf32>
    %c0_43 = arith.constant 0 : index
    %c0_44 = arith.constant 0 : index
    %78 = vector.load %arg10[%c0_43, %c0_44] : memref<1x4xf32, #tpu.memory_space<vmem>>, vector<1x4xf32>
    %79 = vector.broadcast %78 : vector<1x4xf32> to vector<4x4xf32>
    %80 = arith.addf %77, %79 : vector<4x4xf32>
    %81 = tpu.transpose %80, [1, 0] : vector<4x4xf32> -> vector<4x4xf32>
    %c0_45 = arith.constant 0 : index
    %c0_46 = arith.constant 0 : index
    %c0_47 = arith.constant 0 : index
    %82 = vector.load %arg11[%c0_45, %c0_46, %c0_47] : memref<1x4x4xf32, #tpu.memory_space<vmem>>, vector<1x4x4xf32>
    %83 = vector.shape_cast %82 : vector<1x4x4xf32> to vector<4x4xf32>
    %84 = vector.shape_cast %81 : vector<4x4xf32> to vector<1x4x4xf32>
    tpu.vector_store %arg11[%c0_45, %c0_46, %c0_47], %84 {strides = array<i32>} : memref<1x4x4xf32, #tpu.memory_space<vmem>>, vector<1x4x4xf32>,
    return
  }
  func.func @transform_0(%arg0: i32) -> (i32, i32, i32) {
    %c0_i32 = arith.constant 0 : i32
    %c0_i32_0 = arith.constant 0 : i32
    %c0_i32_1 = arith.constant 0 : i32
    return %arg0, %c0_i32, %c0_i32_0 : i32, i32, i32
  }
  func.func @transform_1(%arg0: i32) -> (i32, i32, i32) {
    %c0_i32 = arith.constant 0 : i32
    %c0_i32_0 = arith.constant 0 : i32
    %c0_i32_1 = arith.constant 0 : i32
    return %arg0, %c0_i32, %c0_i32_0 : i32, i32, i32
  }
  func.func @transform_2(%arg0: i32) -> (i32, i32) {
    %c0_i32 = arith.constant 0 : i32
    %c0_i32_0 = arith.constant 0 : i32
    %c0_i32_1 = arith.constant 0 : i32
    return %c0_i32, %c0_i32_0 : i32, i32
  }
  func.func @transform_3(%arg0: i32) -> (i32, i32) {
    %c0_i32 = arith.constant 0 : i32
    %c0_i32_0 = arith.constant 0 : i32
    %c0_i32_1 = arith.constant 0 : i32
    return %c0_i32, %c0_i32_0 : i32, i32
  }
  func.func @transform_4(%arg0: i32) -> (i32, i32) {
    %c0_i32 = arith.constant 0 : i32
    %c0_i32_0 = arith.constant 0 : i32
    %c0_i32_1 = arith.constant 0 : i32
    return %c0_i32, %c0_i32_0 : i32, i32
  }
  func.func @transform_5(%arg0: i32) -> (i32, i32) {
    %c0_i32 = arith.constant 0 : i32
    %c0_i32_0 = arith.constant 0 : i32
    %c0_i32_1 = arith.constant 0 : i32
    return %c0_i32, %c0_i32_0 : i32, i32
  }
  func.func @transform_6(%arg0: i32) -> (i32, i32) {
    %c0_i32 = arith.constant 0 : i32
    %c0_i32_0 = arith.constant 0 : i32
    %c0_i32_1 = arith.constant 0 : i32
    return %c0_i32, %c0_i32_0 : i32, i32
  }
  func.func @transform_7(%arg0: i32) -> (i32, i32) {
    %c0_i32 = arith.constant 0 : i32
    %c0_i32_0 = arith.constant 0 : i32
    %c0_i32_1 = arith.constant 0 : i32
    return %c0_i32, %c0_i32_0 : i32, i32
  }
  func.func @transform_8(%arg0: i32) -> (i32, i32) {
    %c0_i32 = arith.constant 0 : i32
    %c0_i32_0 = arith.constant 0 : i32
    %c0_i32_1 = arith.constant 0 : i32
    return %c0_i32, %c0_i32_0 : i32, i32
  }
  func.func @transform_9(%arg0: i32) -> (i32, i32) {
    %c0_i32 = arith.constant 0 : i32
    %c0_i32_0 = arith.constant 0 : i32
    %c0_i32_1 = arith.constant 0 : i32
    return %c0_i32, %c0_i32_0 : i32, i32
  }
  func.func @transform_10(%arg0: i32) -> (i32, i32, i32) {
    %c0_i32 = arith.constant 0 : i32
    %c0_i32_0 = arith.constant 0 : i32
    %c0_i32_1 = arith.constant 0 : i32
    return %arg0, %c0_i32, %c0_i32_0 : i32, i32, i32
  }
}

</mosaic_0001>

<llo_original>
// kernel: tpu_custom_call.1
$region0: #{tpu_custom_call.1}
  #allocation0 [shape = 'u32[]', space=smem, size = 0x4, offset = 0x4, fixed_abs, tag = 'smem constant byte address 0x4 - core index']
  #allocation1 [shape = 'u32[144,128]{1,0:T(1,128)}', space=vmem, size = 0x12000, scoped, tag = 'internal scratch']
  %s0 = inlined_call_operand.vmem [shape: f32[8,16,16], index: 0, kind: input, shape index: {}]
  %s1 = inlined_call_operand.vmem [shape: f32[8,16,8], index: 1, kind: input, shape index: {}]
  %s2 = inlined_call_operand.vmem [shape: f32[8,16], index: 2, kind: input, shape index: {}]
  %s3 = inlined_call_operand.vmem [shape: f32[1,16], index: 3, kind: input, shape index: {}]
  %s4 = inlined_call_operand.vmem [shape: f32[1,16], index: 4, kind: input, shape index: {}]
  %s5 = inlined_call_operand.vmem [shape: f32[1,16], index: 5, kind: input, shape index: {}]
  %s6 = inlined_call_operand.vmem [shape: f32[48,32], index: 6, kind: input, shape index: {}]
  %s7 = inlined_call_operand.vmem [shape: f32[1,32], index: 7, kind: input, shape index: {}]
  %s8 = inlined_call_operand.vmem [shape: f32[32,4], index: 8, kind: input, shape index: {}]
  %s9 = inlined_call_operand.vmem [shape: f32[1,4], index: 9, kind: input, shape index: {}]
  %s10 = inlined_call_operand.hbm [shape: f32[2,4,4], index: 10, kind: output, shape index: {}]
  %s11 = sld [smem:[#allocation0]]
  $region73: #{tpu_custom_call.1} parent=0
    _
  %s13 = ssub.s32 1, %s11
  %s14 = scalar_select 0, %s13, %s11
  $region1: #{tpu_custom_call.1} parent=0
    #allocation2 [shape = 'u8[4096]{0}', space=vmem, size = 0x1000, scoped, tag = 'output window, operand 0']
    #allocation3 [shape = 's32[2]{0}', space=sflag, size = 0x8, scoped, tag = 'scoped memory for tpu_custom_call.1']
    %15 = vsyncpa [#allocation3], 0
    %s16 = scalar_lea.sflag [#allocation3], 1
    %17 = vsyncpa %s16, 0
    loop: start=0, step=1, limit=4
    $region2: #{tpu_custom_call.1} parent=1 // loop_pre_header
      _
    $region3: #{tpu_custom_call.1} parent=1 // loop_header
      %s19 = sphi 0, %s23
      %p20 = scmp.ge.s32.totalorder %s19, 4
      %s29 = sphi 0, %s31
      %s32 = sphi 0, %s29
      %s33 = sphi 0, %s32
      %s49 = sphi 0, %s33
      %s55 = sphi 0, %s57
      %s58 = sphi 0, %s55
      %s59 = sphi 0, %s58
      %s75 = sphi 0, %s59
      %s79 = sphi 0, %s79
      %s81 = sphi 0, %s79
      %s82 = sphi 0, %s81
      %s96 = sphi 0, %s82
      %s100 = sphi 0, %s100
      %s102 = sphi 0, %s100
      %s103 = sphi 0, %s102
      %s117 = sphi 0, %s103
      %s121 = sphi 0, %s121
      %s123 = sphi 0, %s121
      %s124 = sphi 0, %s123
      %s138 = sphi 0, %s124
      %s142 = sphi 0, %s142
      %s144 = sphi 0, %s142
      %s145 = sphi 0, %s144
      %s159 = sphi 0, %s145
      %s163 = sphi 0, %s163
      %s165 = sphi 0, %s163
      %s166 = sphi 0, %s165
      %s180 = sphi 0, %s166
      %s184 = sphi 0, %s184
      %s186 = sphi 0, %s184
      %s187 = sphi 0, %s186
      %s201 = sphi 0, %s187
      %s205 = sphi 0, %s205
      %s207 = sphi 0, %s205
      %s208 = sphi 0, %s207
      %s222 = sphi 0, %s208
      %s226 = sphi 0, %s226
      %s228 = sphi 0, %s226
      %s229 = sphi 0, %s228
      %s243 = sphi 0, %s229
      %s249 = sphi 0, %s251
      %s252 = sphi 0, %s249
      %s253 = sphi 0, %s252
      %s269 = sphi 0, %s253
    $region4: #{tpu_custom_call.1} parent=1 // loop_header_branch
      %22 = sbr.rel (%p20) target = $region8
    $region5: #{tpu_custom_call.1} parent=1 // loop_body
      %s24 = ssub.s32 %s19, 1
      %s25 = ssub.s32 %s19, 2
      %s26 = sadd.s32 %s19, 1
      %s27 = ssub.s32 %s19, %s26
      %p28 = scmp.eq.s32.totalorder %s27, 0
      %s30 = sadd.s32 %s29, 1
      %s31 = scalar_select %p28, %s29, %s30
      %p34 = pneg %p28
      %p35 = scmp.eq.s32.totalorder %s19, 1
      %p36 = por %p34, %p35
      %p37 = scmp.ne.s32.totalorder %s29, %s32
      %p38 = scmp.eq.s32.totalorder %s19, 0
      %p39 = por %p37, %p38
      %p40 = scmp.ne.s32.totalorder %s29, %s32
      %p41 = scmp.eq.s32.totalorder %s24, 1
      %p42 = por %p40, %p41
      %p43 = scmp.ne.s32.totalorder %s32, %s33
      %p44 = scmp.eq.s32.totalorder %s24, 0
      %p45 = por %p43, %p44
      %p46 = scmp.ne.s32.totalorder %s32, %s33
      %p47 = scmp.eq.s32.totalorder %s25, 1
      %p48 = por %p46, %p47
      %p50 = scmp.ne.s32.totalorder %s33, %s49
      %p51 = scmp.eq.s32.totalorder %s25, 0
      %p52 = por %p50, %p51
      %s53 = ssub.s32 %s19, %s26
      %p54 = scmp.eq.s32.totalorder %s53, 0
      %s56 = sadd.s32 %s55, 1
      %s57 = scalar_select %p54, %s55, %s56
      %p60 = pneg %p54
      %p61 = scmp.eq.s32.totalorder %s19, 1
      %p62 = por %p60, %p61
      %p63 = scmp.ne.s32.totalorder %s55, %s58
      %p64 = scmp.eq.s32.totalorder %s19, 0
      %p65 = por %p63, %p64
      %p66 = scmp.ne.s32.totalorder %s55, %s58
      %p67 = scmp.eq.s32.totalorder %s24, 1
      %p68 = por %p66, %p67
      %p69 = scmp.ne.s32.totalorder %s58, %s59
      %p70 = scmp.eq.s32.totalorder %s24, 0
      %p71 = por %p69, %p70
      %p72 = scmp.ne.s32.totalorder %s58, %s59
      %p73 = scmp.eq.s32.totalorder %s25, 1
      %p74 = por %p72, %p73
      %p76 = scmp.ne.s32.totalorder %s59, %s75
      %p77 = scmp.eq.s32.totalorder %s25, 0
      %p78 = por %p76, %p77
      %s80 = sadd.s32 %s79, 1
      %p83 = scmp.eq.s32.totalorder %s19, 1
      %p84 = scmp.ne.s32.totalorder %s79, %s81
      %p85 = scmp.eq.s32.totalorder %s19, 0
      %p86 = por %p84, %p85
      %p87 = scmp.ne.s32.totalorder %s79, %s81
      %p88 = scmp.eq.s32.totalorder %s24, 1
      %p89 = por %p87, %p88
      %p90 = scmp.ne.s32.totalorder %s81, %s82
      %p91 = scmp.eq.s32.totalorder %s24, 0
      %p92 = por %p90, %p91
      %p93 = scmp.ne.s32.totalorder %s81, %s82
      %p94 = scmp.eq.s32.totalorder %s25, 1
      %p95 = por %p93, %p94
      %p97 = scmp.ne.s32.totalorder %s82, %s96
      %p98 = scmp.eq.s32.totalorder %s25, 0
      %p99 = por %p97, %p98
      %s101 = sadd.s32 %s100, 1
      %p104 = scmp.eq.s32.totalorder %s19, 1
      %p105 = scmp.ne.s32.totalorder %s100, %s102
      %p106 = scmp.eq.s32.totalorder %s19, 0
      %p107 = por %p105, %p106
      %p108 = scmp.ne.s32.totalorder %s100, %s102
      %p109 = scmp.eq.s32.totalorder %s24, 1
      %p110 = por %p108, %p109
      %p111 = scmp.ne.s32.totalorder %s102, %s103
      %p112 = scmp.eq.s32.totalorder %s24, 0
      %p113 = por %p111, %p112
      %p114 = scmp.ne.s32.totalorder %s102, %s103
      %p115 = scmp.eq.s32.totalorder %s25, 1
      %p116 = por %p114, %p115
      %p118 = scmp.ne.s32.totalorder %s103, %s117
      %p119 = scmp.eq.s32.totalorder %s25, 0
      %p120 = por %p118, %p119
      %s122 = sadd.s32 %s121, 1
      %p125 = scmp.eq.s32.totalorder %s19, 1
      %p126 = scmp.ne.s32.totalorder %s121, %s123
      %p127 = scmp.eq.s32.totalorder %s19, 0
      %p128 = por %p126, %p127
      %p129 = scmp.ne.s32.totalorder %s121, %s123
      %p130 = scmp.eq.s32.totalorder %s24, 1
      %p131 = por %p129, %p130
      %p132 = scmp.ne.s32.totalorder %s123, %s124
      %p133 = scmp.eq.s32.totalorder %s24, 0
      %p134 = por %p132, %p133
      %p135 = scmp.ne.s32.totalorder %s123, %s124
      %p136 = scmp.eq.s32.totalorder %s25, 1
      %p137 = por %p135, %p136
      %p139 = scmp.ne.s32.totalorder %s124, %s138
      %p140 = scmp.eq.s32.totalorder %s25, 0
      %p141 = por %p139, %p140
      %s143 = sadd.s32 %s142, 1
      %p146 = scmp.eq.s32.totalorder %s19, 1
      %p147 = scmp.ne.s32.totalorder %s142, %s144
      %p148 = scmp.eq.s32.totalorder %s19, 0
      %p149 = por %p147, %p148
      %p150 = scmp.ne.s32.totalorder %s142, %s144
      %p151 = scmp.eq.s32.totalorder %s24, 1
      %p152 = por %p150, %p151
      %p153 = scmp.ne.s32.totalorder %s144, %s145
      %p154 = scmp.eq.s32.totalorder %s24, 0
      %p155 = por %p153, %p154
      %p156 = scmp.ne.s32.totalorder %s144, %s145
      %p157 = scmp.eq.s32.totalorder %s25, 1
      %p158 = por %p156, %p157
      %p160 = scmp.ne.s32.totalorder %s145, %s159
      %p161 = scmp.eq.s32.totalorder %s25, 0
      %p162 = por %p160, %p161
      %s164 = sadd.s32 %s163, 1
      %p167 = scmp.eq.s32.totalorder %s19, 1
      %p168 = scmp.ne.s32.totalorder %s163, %s165
      %p169 = scmp.eq.s32.totalorder %s19, 0
      %p170 = por %p168, %p169
      %p171 = scmp.ne.s32.totalorder %s163, %s165
      %p172 = scmp.eq.s32.totalorder %s24, 1
      %p173 = por %p171, %p172
      %p174 = scmp.ne.s32.totalorder %s165, %s166
      %p175 = scmp.eq.s32.totalorder %s24, 0
      %p176 = por %p174, %p175
      %p177 = scmp.ne.s32.totalorder %s165, %s166
      %p178 = scmp.eq.s32.totalorder %s25, 1
      %p179 = por %p177, %p178
      %p181 = scmp.ne.s32.totalorder %s166, %s180
      %p182 = scmp.eq.s32.totalorder %s25, 0
      %p183 = por %p181, %p182
      %s185 = sadd.s32 %s184, 1
      %p188 = scmp.eq.s32.totalorder %s19, 1
      %p189 = scmp.ne.s32.totalorder %s184, %s186
      %p190 = scmp.eq.s32.totalorder %s19, 0
      %p191 = por %p189, %p190
      %p192 = scmp.ne.s32.totalorder %s184, %s186
      %p193 = scmp.eq.s32.totalorder %s24, 1
      %p194 = por %p192, %p193
      %p195 = scmp.ne.s32.totalorder %s186, %s187
      %p196 = scmp.eq.s32.totalorder %s24, 0
      %p197 = por %p195, %p196
      %p198 = scmp.ne.s32.totalorder %s186, %s187
      %p199 = scmp.eq.s32.totalorder %s25, 1
      %p200 = por %p198, %p199
      %p202 = scmp.ne.s32.totalorder %s187, %s201
      %p203 = scmp.eq.s32.totalorder %s25, 0
      %p204 = por %p202, %p203
      %s206 = sadd.s32 %s205, 1
      %p209 = scmp.eq.s32.totalorder %s19, 1
      %p210 = scmp.ne.s32.totalorder %s205, %s207
      %p211 = scmp.eq.s32.totalorder %s19, 0
      %p212 = por %p210, %p211
      %p213 = scmp.ne.s32.totalorder %s205, %s207
      %p214 = scmp.eq.s32.totalorder %s24, 1
      %p215 = por %p213, %p214
      %p216 = scmp.ne.s32.totalorder %s207, %s208
      %p217 = scmp.eq.s32.totalorder %s24, 0
      %p218 = por %p216, %p217
      %p219 = scmp.ne.s32.totalorder %s207, %s208
      %p220 = scmp.eq.s32.totalorder %s25, 1
      %p221 = por %p219, %p220
      %p223 = scmp.ne.s32.totalorder %s208, %s222
      %p224 = scmp.eq.s32.totalorder %s25, 0
      %p225 = por %p223, %p224
      %s227 = sadd.s32 %s226, 1
      %p230 = scmp.eq.s32.totalorder %s19, 1
      %p231 = scmp.ne.s32.totalorder %s226, %s228
      %p232 = scmp.eq.s32.totalorder %s19, 0
      %p233 = por %p231, %p232
      %p234 = scmp.ne.s32.totalorder %s226, %s228
      %p235 = scmp.eq.s32.totalorder %s24, 1
      %p236 = por %p234, %p235
      %p237 = scmp.ne.s32.totalorder %s228, %s229
      %p238 = scmp.eq.s32.totalorder %s24, 0
      %p239 = por %p237, %p238
      %p240 = scmp.ne.s32.totalorder %s228, %s229
      %p241 = scmp.eq.s32.totalorder %s25, 1
      %p242 = por %p240, %p241
      %p244 = scmp.ne.s32.totalorder %s229, %s243
      %p245 = scmp.eq.s32.totalorder %s25, 0
      %p246 = por %p244, %p245
      %s247 = ssub.s32 %s19, %s26
      %p248 = scmp.eq.s32.totalorder %s247, 0
      %s250 = sadd.s32 %s249, 1
      %s251 = scalar_select %p248, %s249, %s250
      %p254 = pneg %p248
      %p255 = scmp.eq.s32.totalorder %s19, 1
      %p256 = por %p254, %p255
      %p257 = scmp.ne.s32.totalorder %s249, %s252
      %p258 = scmp.eq.s32.totalorder %s19, 0
      %p259 = por %p257, %p258
      %p260 = scmp.ne.s32.totalorder %s249, %s252
      %p261 = scmp.eq.s32.totalorder %s24, 1
      %p262 = por %p260, %p261
      %p263 = scmp.ne.s32.totalorder %s252, %s253
      %p264 = scmp.eq.s32.totalorder %s24, 0
      %p265 = por %p263, %p264
      %p266 = scmp.ne.s32.totalorder %s252, %s253
      %p267 = scmp.eq.s32.totalorder %s25, 1
      %p268 = por %p266, %p267
      %p270 = scmp.ne.s32.totalorder %s253, %s269
      %p271 = scmp.eq.s32.totalorder %s25, 0
      %p272 = por %p270, %p271
      %p273 = scmp.le.s32.totalorder 1, %s19
      %p274 = scmp.lt.s32.totalorder %s19, 3
      %p275 = pnand %p273, %p274
      %p276 = pneg %p275
      // Predicated region
      $region9: #{tpu_custom_call.1} parent=5 // pred_check
        _
      $region10: #{tpu_custom_call.1} parent=5 // pred_check_branch
        %278 = sbr.rel (%p275) target = $region12
      $region11: #{tpu_custom_call.1} parent=5 // pred_region
        %s279 = ssub.s32 %s19, 1
        // Predicated region
        $region13: #{tpu_custom_call.1} parent=11 // pred_check
          %p280 = pneg %p92
        $region14: #{tpu_custom_call.1} parent=11 // pred_check_branch
          %282 = sbr.rel (%p280) target = $region16
        $region15: #{tpu_custom_call.1} parent=11 // pred_region
          _
        $region16: #{tpu_custom_call.1} parent=11 // pred_fallthru
          _
        // Predicated region
        $region17: #{tpu_custom_call.1} parent=11 // pred_check
          %p283 = pneg %p113
        $region18: #{tpu_custom_call.1} parent=11 // pred_check_branch
          %285 = sbr.rel (%p283) target = $region20
        $region19: #{tpu_custom_call.1} parent=11 // pred_region
          _
        $region20: #{tpu_custom_call.1} parent=11 // pred_fallthru
          _
        // Predicated region
        $region21: #{tpu_custom_call.1} parent=11 // pred_check
          %p286 = pneg %p134
        $region22: #{tpu_custom_call.1} parent=11 // pred_check_branch
          %288 = sbr.rel (%p286) target = $region24
        $region23: #{tpu_custom_call.1} parent=11 // pred_region
          _
        $region24: #{tpu_custom_call.1} parent=11 // pred_fallthru
          _
        // Predicated region
        $region25: #{tpu_custom_call.1} parent=11 // pred_check
          %p289 = pneg %p155
        $region26: #{tpu_custom_call.1} parent=11 // pred_check_branch
          %291 = sbr.rel (%p289) target = $region28
        $region27: #{tpu_custom_call.1} parent=11 // pred_region
          _
        $region28: #{tpu_custom_call.1} parent=11 // pred_fallthru
          _
        // Predicated region
        $region29: #{tpu_custom_call.1} parent=11 // pred_check
          %p292 = pneg %p176
        $region30: #{tpu_custom_call.1} parent=11 // pred_check_branch
          %294 = sbr.rel (%p292) target = $region32
        $region31: #{tpu_custom_call.1} parent=11 // pred_region
          _
        $region32: #{tpu_custom_call.1} parent=11 // pred_fallthru
          _
        // Predicated region
        $region33: #{tpu_custom_call.1} parent=11 // pred_check
          %p295 = pneg %p197
        $region34: #{tpu_custom_call.1} parent=11 // pred_check_branch
          %297 = sbr.rel (%p295) target = $region36
        $region35: #{tpu_custom_call.1} parent=11 // pred_region
          _
        $region36: #{tpu_custom_call.1} parent=11 // pred_fallthru
          _
        // Predicated region
        $region37: #{tpu_custom_call.1} parent=11 // pred_check
          %p298 = pneg %p218
        $region38: #{tpu_custom_call.1} parent=11 // pred_check_branch
          %300 = sbr.rel (%p298) target = $region40
        $region39: #{tpu_custom_call.1} parent=11 // pred_region
          _
        $region40: #{tpu_custom_call.1} parent=11 // pred_fallthru
          _
        // Predicated region
        $region41: #{tpu_custom_call.1} parent=11 // pred_check
          %p301 = pneg %p239
        $region42: #{tpu_custom_call.1} parent=11 // pred_check_branch
          %303 = sbr.rel (%p301) target = $region44
        $region43: #{tpu_custom_call.1} parent=11 // pred_region
          _
        $region44: #{tpu_custom_call.1} parent=11 // pred_fallthru
          _
      $region12: #{tpu_custom_call.1} parent=5 // pred_fallthru
        _
      %p304 = scmp.lt.s32.totalorder %s19, 2
      // Predicated region
      $region45: #{tpu_custom_call.1} parent=5 // pred_check
        %p305 = pneg %p304
      $region46: #{tpu_custom_call.1} parent=5 // pred_check_branch
        %307 = sbr.rel (%p305) target = $region48
      $region47: #{tpu_custom_call.1} parent=5 // pred_region
        // Predicated region
        $region49: #{tpu_custom_call.1} parent=47 // pred_check
          %p308 = pneg %p39
        $region50: #{tpu_custom_call.1} parent=47 // pred_check_branch
          %310 = sbr.rel (%p308) target = $region52
        $region51: #{tpu_custom_call.1} parent=47 // pred_region
          %s311 = smul.u32 4, %s19
          %p312 = scmp.lt.s32.totalorder %s311, 7
          %s313 = scalar_select %p312, %s311, 7
          %s314 = smul.addr %s313, 2
          %s315 = smul.addr %s314, 8
          %s316 = scalar_lea.vmem %s0, %s315
          %s317 = smul.u32 4, %s19
        $region52: #{tpu_custom_call.1} parent=47 // pred_fallthru
          _
        // Predicated region
        $region53: #{tpu_custom_call.1} parent=47 // pred_check
          %p318 = pneg %p65
        $region54: #{tpu_custom_call.1} parent=47 // pred_check_branch
          %320 = sbr.rel (%p318) target = $region56
        $region55: #{tpu_custom_call.1} parent=47 // pred_region
          %s321 = smul.u32 4, %s19
          %p322 = scmp.lt.s32.totalorder %s321, 7
          %s323 = scalar_select %p322, %s321, 7
          %s324 = smul.addr %s323, 2
          %s325 = smul.addr %s324, 8
          %s326 = scalar_lea.vmem %s1, %s325
          %s327 = smul.u32 4, %s19
        $region56: #{tpu_custom_call.1} parent=47 // pred_fallthru
          _
      $region48: #{tpu_custom_call.1} parent=5 // pred_fallthru
        _
      %p328 = scmp.le.s32.totalorder 1, %s19
      %p329 = scmp.lt.s32.totalorder %s19, 3
      %p330 = pnand %p328, %p329
      %p331 = pneg %p330
      // Predicated region
      $region57: #{tpu_custom_call.1} parent=5 // pred_check
        _
      $region58: #{tpu_custom_call.1} parent=5 // pred_check_branch
        %333 = sbr.rel (%p330) target = $region60
      $region59: #{tpu_custom_call.1} parent=5 // pred_region
        %s334 = ssub.s32 %s19, 1
        %s335 = smul.u32 4, %s24
        %p336 = scmp.lt.s32.totalorder %s335, 7
        %s337 = scalar_select %p336, %s335, 7
        %s338 = smul.addr %s337, 2
        %s339 = smul.addr %s338, 8
        %s340 = scalar_lea.vmem %s0, %s339
        %p341 = pneg %p45
        %p342 = pneg %p42
        %s343 = smul.u32 4, %s24
        %p344 = scmp.lt.s32.totalorder %s343, 7
        %s345 = scalar_select %p344, %s343, 7
        %s346 = smul.addr %s345, 2
        %s347 = smul.addr %s346, 8
        %s348 = scalar_lea.vmem %s1, %s347
        %p349 = pneg %p71
        %p350 = pneg %p68
        %p351 = pneg %p92
        %p352 = pneg %p89
        %p353 = pneg %p113
        %p354 = pneg %p110
        %p355 = pneg %p134
        %p356 = pneg %p131
        %p357 = pneg %p155
        %p358 = pneg %p152
        %p359 = pneg %p176
        %p360 = pneg %p173
        %p361 = pneg %p197
        %p362 = pneg %p194
        %p363 = pneg %p218
        %p364 = pneg %p215
        %p365 = pneg %p239
        %p366 = pneg %p236
        %p367 = pneg %p265
        %p368 = pneg %p262
        %s369 = sand.u32 %s252, 1
        %s370 = scalar_lea.sflag [#allocation3], %s369
        %s371 = sand.u32 %s252, 1
        %s372 = smul.addr %s371, 4
        %s373 = scalar_lea.vmem [#allocation2], %s372
        %s374 = smul.u32 4, %s24
        %p375 = scmp.lt.s32.totalorder %s374, 7
        %s376 = scalar_select %p375, %s374, 7
        %s377 = smul.addr %s376, 2
        %s378 = smul.addr %s377, 8
        %s379 = scalar_lea.vmem %s0, %s378
        %s380 = smul.u32 4, %s24
        %s381 = smul.u32 4, %s24
        %p382 = scmp.lt.s32.totalorder %s381, 7
        %s383 = scalar_select %p382, %s381, 7
        %s384 = smul.addr %s383, 2
        %s385 = smul.addr %s384, 8
        %s386 = scalar_lea.vmem %s1, %s385
        %s387 = smul.u32 4, %s24
        %v388 = vld [vmem:[%s379] sm:$0xff]
        %v389 = vld [vmem:[%s379 + $0x8] sm:$0xff]
        %v390 = vld [vmem:[%s379 + $0x10] sm:$0xff]
        %v391 = vld [vmem:[%s379 + $0x18] sm:$0xff]
        %v392 = vld [vmem:[%s379 + $0x20] sm:$0xff]
        %v393 = vld [vmem:[%s379 + $0x28] sm:$0xff]
        %v394 = vld [vmem:[%s379 + $0x30] sm:$0xff]
        %v395 = vld [vmem:[%s379 + $0x38] sm:$0xff]
        %v396 = vld [vmem:[%s386] sm:$0xff]
        %v397 = vld [vmem:[%s386 + $0x8] sm:$0xff]
        %v398 = vld [vmem:[%s386 + $0x10] sm:$0xff]
        %v399 = vld [vmem:[%s386 + $0x18] sm:$0xff]
        %v400 = vld [vmem:[%s386 + $0x20] sm:$0xff]
        %v401 = vld [vmem:[%s386 + $0x28] sm:$0xff]
        %v402 = vld [vmem:[%s386 + $0x30] sm:$0xff]
        %v403 = vld [vmem:[%s386 + $0x38] sm:$0xff]
        %vm404 = vcmp.ne.f32.partialorder %v388, 0.0
        %vm405 = vcmp.ne.f32.partialorder %v389, 0.0
        %vm406 = vcmp.ne.f32.partialorder %v390, 0.0
        %vm407 = vcmp.ne.f32.partialorder %v391, 0.0
        %vm408 = vcmp.ne.f32.partialorder %v392, 0.0
        %vm409 = vcmp.ne.f32.partialorder %v393, 0.0
        %vm410 = vcmp.ne.f32.partialorder %v394, 0.0
        %vm411 = vcmp.ne.f32.partialorder %v395, 0.0
        %v412 = vsel %vm404, 1, 0
        %v413 = vsel %vm405, 1, 0
        %v414 = vsel %vm406, 1, 0
        %v415 = vsel %vm407, 1, 0
        %v416 = vsel %vm408, 1, 0
        %v417 = vsel %vm409, 1, 0
        %v418 = vsel %vm410, 1, 0
        %v419 = vsel %vm411, 1, 0
        %v420 = vcvt.s32.f32 %v412
        %v421 = vcvt.s32.f32 %v413
        %v422 = vcvt.s32.f32 %v414
        %v423 = vcvt.s32.f32 %v415
        %v424 = vcvt.s32.f32 %v416
        %v425 = vcvt.s32.f32 %v417
        %v426 = vcvt.s32.f32 %v418
        %v427 = vcvt.s32.f32 %v419
        %vm428 = vcmask 130048
        %v429 = vsel %vm428, %v420, 0.0
        %430 = vadd.xlane.f32.xlu0 %v429
        %v431 = vpop.xlane.xlu0 %430
        %v432 = vsel %vm428, %v421, 0.0
        %433 = vadd.xlane.f32.xlu0 %v432
        %v434 = vpop.xlane.xlu0 %433
        %v435 = vsel %vm428, %v422, 0.0
        %436 = vadd.xlane.f32.xlu0 %v435
        %v437 = vpop.xlane.xlu0 %436
        %v438 = vsel %vm428, %v423, 0.0
        %439 = vadd.xlane.f32.xlu0 %v438
        %v440 = vpop.xlane.xlu0 %439
        %v441 = vsel %vm428, %v424, 0.0
        %442 = vadd.xlane.f32.xlu0 %v441
        %v443 = vpop.xlane.xlu0 %442
        %v444 = vsel %vm428, %v425, 0.0
        %445 = vadd.xlane.f32.xlu0 %v444
        %v446 = vpop.xlane.xlu0 %445
        %v447 = vsel %vm428, %v426, 0.0
        %448 = vadd.xlane.f32.xlu0 %v447
        %v449 = vpop.xlane.xlu0 %448
        %v450 = vsel %vm428, %v427, 0.0
        %451 = vadd.xlane.f32.xlu0 %v450
        %v452 = vpop.xlane.xlu0 %451
        %v453 = vadd.f32 %v429, %v432
        %v454 = vrot.slane %v453, 4
        %v455 = vadd.f32 %v453, %v454
        %v456 = vrot.slane %v455, 2
        %v457 = vadd.f32 %v455, %v456
        %v458 = vrot.slane %v457, 1
        %v459 = vadd.f32 %v457, %v458
        %v460 = vadd.f32 %v435, %v438
        %v461 = vrot.slane %v460, 4
        %v462 = vadd.f32 %v460, %v461
        %v463 = vrot.slane %v462, 2
        %v464 = vadd.f32 %v462, %v463
        %v465 = vrot.slane %v464, 1
        %v466 = vadd.f32 %v464, %v465
        %v467 = vadd.f32 %v441, %v444
        %v468 = vrot.slane %v467, 4
        %v469 = vadd.f32 %v467, %v468
        %v470 = vrot.slane %v469, 2
        %v471 = vadd.f32 %v469, %v470
        %v472 = vrot.slane %v471, 1
        %v473 = vadd.f32 %v471, %v472
        %v474 = vadd.f32 %v447, %v450
        %v475 = vrot.slane %v474, 4
        %v476 = vadd.f32 %v474, %v475
        %v477 = vrot.slane %v476, 2
        %v478 = vadd.f32 %v476, %v477
        %v479 = vrot.slane %v478, 1
        %v480 = vadd.f32 %v478, %v479
        %v481 = vmax.f32 %v431, 1.0
        %v482 = vmax.f32 %v434, 1.0
        %v483 = vmax.f32 %v437, 1.0
        %v484 = vmax.f32 %v440, 1.0
        %v485 = vmax.f32 %v443, 1.0
        %v486 = vmax.f32 %v446, 1.0
        %v487 = vmax.f32 %v449, 1.0
        %v488 = vmax.f32 %v452, 1.0
        %v489 = vrsqrt.pop %v481
        %v490 = vrsqrt.pop %v482
        %v491 = vrsqrt.pop %v483
        %v492 = vrsqrt.pop %v484
        %v493 = vrsqrt.pop %v485
        %v494 = vrsqrt.pop %v486
        %v495 = vrsqrt.pop %v487
        %v496 = vrsqrt.pop %v488
        %v497 = vmax.f32 %v459, 1.0
        %v498 = vmax.f32 %v466, 1.0
        %v499 = vmax.f32 %v473, 1.0
        %v500 = vmax.f32 %v480, 1.0
        %v501 = vrsqrt.pop %v497
        %v502 = vrsqrt.pop %v498
        %v503 = vrsqrt.pop %v499
        %v504 = vrsqrt.pop %v500
        %v505 = vmul.f32 %v388, %v489
        %v506 = vmul.f32 %v389, %v490
        %v507 = vmul.f32 %v390, %v491
        %v508 = vmul.f32 %v391, %v492
        %v509 = vmul.f32 %v392, %v493
        %v510 = vmul.f32 %v393, %v494
        %v511 = vmul.f32 %v394, %v495
        %v512 = vmul.f32 %v395, %v496
        %v513 = vmul.f32 %v505, %v501
        %v514 = vmul.f32 %v506, %v501
        %v515 = vmul.f32 %v507, %v502
        %v516 = vmul.f32 %v508, %v502
        %v517 = vmul.f32 %v509, %v503
        %v518 = vmul.f32 %v510, %v503
        %v519 = vmul.f32 %v511, %v504
        %v520 = vmul.f32 %v512, %v504
        %v522 = vsel %vm428, %v513, 0
        %v525 = vsel %vm428, %v514, 0
        %527 = vmatprep.subr.mxu0 0.0
        %528 = vmatpush1.msra.mxu0 0.0
        %529 = vmatprep.subr.mxu0 0.0
        %530 = vmatpush1.msra.mxu0 0.0
        %531 = vmatprep.subr.mxu0 0.0
        %532 = vmatpush1.msra.mxu0 0.0
        %533 = vmatprep.subr.mxu0 0.0
        %534 = vmatpush1.msra.mxu0 0.0
        %535 = vmatprep.subr.mxu0 0.0
        %536 = vmatpush1.msra.mxu0 0.0
        %537 = vmatprep.subr.mxu0 0.0
        %538 = vmatpush1.msra.mxu0 0.0
        %539 = vmatprep.subr.mxu0 0.0
        %540 = vmatpush1.msra.mxu0 0.0
        %541 = vmatprep.subr.mxu0 0.0
        %542 = vmatpush1.msra.mxu0 0.0
        %543 = vmatprep.subr.mxu0 0.0
        %544 = vmatpush1.msra.mxu0 0.0
        %545 = vmatprep.subr.mxu0 0.0
        %546 = vmatpush1.msra.mxu0 0.0
        %547 = vmatprep.subr.mxu0 0.0
        %548 = vmatpush1.msra.mxu0 0.0
        %549 = vmatprep.subr.mxu0 0.0
        %550 = vmatpush1.msra.mxu0 0.0
        %551 = vmatprep.subr.mxu0 0.0
        %552 = vmatpush1.msra.mxu0 0.0
        %553 = vmatprep.subr.mxu0 0.0
        %554 = vmatpush1.msra.mxu0 0.0
        %555 = vmatprep.subr.mxu0 0.0
        %556 = vmatpush1.msra.mxu0 %v397
        %557 = vmatprep.subr.mxu0 0.0
        %558 = vmatpush1.msra.mxu0 %v396
        %559 = vmatprep.subr.mxu0 0.0
        %560 = vmatpush2.msra.mxu0 0.0
        %561 = vmatprep.subr.mxu0 0.0
        %562 = vmatpush2.msra.mxu0 0.0
        %563 = vmatprep.subr.mxu0 0.0
        %564 = vmatpush2.msra.mxu0 0.0
        %565 = vmatprep.subr.mxu0 0.0
        %566 = vmatpush2.msra.mxu0 0.0
        %567 = vmatprep.subr.mxu0 0.0
        %568 = vmatpush2.msra.mxu0 0.0
        %569 = vmatprep.subr.mxu0 0.0
        %570 = vmatpush2.msra.mxu0 0.0
        %571 = vmatprep.subr.mxu0 0.0
        %572 = vmatpush2.msra.mxu0 0.0
        %573 = vmatprep.subr.mxu0 0.0
        %574 = vmatpush2.msra.mxu0 0.0
        %575 = vmatprep.subr.mxu0 0.0
        %576 = vmatpush2.msra.mxu0 0.0
        %577 = vmatprep.subr.mxu0 0.0
        %578 = vmatpush2.msra.mxu0 0.0
        %579 = vmatprep.subr.mxu0 0.0
        %580 = vmatpush2.msra.mxu0 0.0
        %581 = vmatprep.subr.mxu0 0.0
        %582 = vmatpush2.msra.mxu0 0.0
        %583 = vmatprep.subr.mxu0 0.0
        %584 = vmatpush2.msra.mxu0 0.0
        %585 = vmatprep.subr.mxu0 0.0
        %586 = vmatpush2.msra.mxu0 0.0
        %587 = vmatprep.subr.mxu0 0.0
        %588 = vmatpush2.msra.mxu0 0.0
        %589 = vmatprep.subr.mxu0 0.0
        %590 = vmatpush2.msra.mxu0 0.0
        %591 = vmatprep.mubr.f32.mxu0 0.0
        %592 = vmatmul.mubr.f32.gmra.mxu0 %v522
        %v593 = vpop.f32.mrf.mxu0
        %v594 = vadd.f32 0.0, %v593
        %v595 = vpop.f32.mrf.mxu0
        %596 = vmatprep.mubr.f32.mxu0 0.0
        %597 = vmatmul.mubr.f32.gmra.mxu0 %v525
        %v598 = vpop.f32.mrf.mxu0
        %v599 = vadd.f32 0.0, %v598
        %v600 = vpop.f32.mrf.mxu0
        %601 = vdwg.mxu0
        %v603 = vsel %vm428, %v515, 0
        %v606 = vsel %vm428, %v516, 0
        %608 = vmatprep.subr.mxu0 0.0
        %609 = vmatpush1.msra.mxu0 0.0
        %610 = vmatprep.subr.mxu0 0.0
        %611 = vmatpush1.msra.mxu0 0.0
        %612 = vmatprep.subr.mxu0 0.0
        %613 = vmatpush1.msra.mxu0 0.0
        %614 = vmatprep.subr.mxu0 0.0
        %615 = vmatpush1.msra.mxu0 0.0
        %616 = vmatprep.subr.mxu0 0.0
        %617 = vmatpush1.msra.mxu0 0.0
        %618 = vmatprep.subr.mxu0 0.0
        %619 = vmatpush1.msra.mxu0 0.0
        %620 = vmatprep.subr.mxu0 0.0
        %621 = vmatpush1.msra.mxu0 0.0
        %622 = vmatprep.subr.mxu0 0.0
        %623 = vmatpush1.msra.mxu0 0.0
        %624 = vmatprep.subr.mxu0 0.0
        %625 = vmatpush1.msra.mxu0 0.0
        %626 = vmatprep.subr.mxu0 0.0
        %627 = vmatpush1.msra.mxu0 0.0
        %628 = vmatprep.subr.mxu0 0.0
        %629 = vmatpush1.msra.mxu0 0.0
        %630 = vmatprep.subr.mxu0 0.0
        %631 = vmatpush1.msra.mxu0 0.0
        %632 = vmatprep.subr.mxu0 0.0
        %633 = vmatpush1.msra.mxu0 0.0
        %634 = vmatprep.subr.mxu0 0.0
        %635 = vmatpush1.msra.mxu0 0.0
        %636 = vmatprep.subr.mxu0 0.0
        %637 = vmatpush1.msra.mxu0 %v399
        %638 = vmatprep.subr.mxu0 0.0
        %639 = vmatpush1.msra.mxu0 %v398
        %640 = vmatprep.subr.mxu0 0.0
        %641 = vmatpush2.msra.mxu0 0.0
        %642 = vmatprep.subr.mxu0 0.0
        %643 = vmatpush2.msra.mxu0 0.0
        %644 = vmatprep.subr.mxu0 0.0
        %645 = vmatpush2.msra.mxu0 0.0
        %646 = vmatprep.subr.mxu0 0.0
        %647 = vmatpush2.msra.mxu0 0.0
        %648 = vmatprep.subr.mxu0 0.0
        %649 = vmatpush2.msra.mxu0 0.0
        %650 = vmatprep.subr.mxu0 0.0
        %651 = vmatpush2.msra.mxu0 0.0
        %652 = vmatprep.subr.mxu0 0.0
        %653 = vmatpush2.msra.mxu0 0.0
        %654 = vmatprep.subr.mxu0 0.0
        %655 = vmatpush2.msra.mxu0 0.0
        %656 = vmatprep.subr.mxu0 0.0
        %657 = vmatpush2.msra.mxu0 0.0
        %658 = vmatprep.subr.mxu0 0.0
        %659 = vmatpush2.msra.mxu0 0.0
        %660 = vmatprep.subr.mxu0 0.0
        %661 = vmatpush2.msra.mxu0 0.0
        %662 = vmatprep.subr.mxu0 0.0
        %663 = vmatpush2.msra.mxu0 0.0
        %664 = vmatprep.subr.mxu0 0.0
        %665 = vmatpush2.msra.mxu0 0.0
        %666 = vmatprep.subr.mxu0 0.0
        %667 = vmatpush2.msra.mxu0 0.0
        %668 = vmatprep.subr.mxu0 0.0
        %669 = vmatpush2.msra.mxu0 0.0
        %670 = vmatprep.subr.mxu0 0.0
        %671 = vmatpush2.msra.mxu0 0.0
        %672 = vmatprep.mubr.f32.mxu0 0.0
        %673 = vmatmul.mubr.f32.gmra.mxu0 %v603
        %v674 = vpop.f32.mrf.mxu0
        %v675 = vadd.f32 0.0, %v674
        %v676 = vpop.f32.mrf.mxu0
        %677 = vmatprep.mubr.f32.mxu0 0.0
        %678 = vmatmul.mubr.f32.gmra.mxu0 %v606
        %v679 = vpop.f32.mrf.mxu0
        %v680 = vadd.f32 0.0, %v679
        %v681 = vpop.f32.mrf.mxu0
        %682 = vdwg.mxu0
        %v684 = vsel %vm428, %v517, 0
        %v687 = vsel %vm428, %v518, 0
        %689 = vmatprep.subr.mxu0 0.0
        %690 = vmatpush1.msra.mxu0 0.0
        %691 = vmatprep.subr.mxu0 0.0
        %692 = vmatpush1.msra.mxu0 0.0
        %693 = vmatprep.subr.mxu0 0.0
        %694 = vmatpush1.msra.mxu0 0.0
        %695 = vmatprep.subr.mxu0 0.0
        %696 = vmatpush1.msra.mxu0 0.0
        %697 = vmatprep.subr.mxu0 0.0
        %698 = vmatpush1.msra.mxu0 0.0
        %699 = vmatprep.subr.mxu0 0.0
        %700 = vmatpush1.msra.mxu0 0.0
        %701 = vmatprep.subr.mxu0 0.0
        %702 = vmatpush1.msra.mxu0 0.0
        %703 = vmatprep.subr.mxu0 0.0
        %704 = vmatpush1.msra.mxu0 0.0
        %705 = vmatprep.subr.mxu0 0.0
        %706 = vmatpush1.msra.mxu0 0.0
        %707 = vmatprep.subr.mxu0 0.0
        %708 = vmatpush1.msra.mxu0 0.0
        %709 = vmatprep.subr.mxu0 0.0
        %710 = vmatpush1.msra.mxu0 0.0
        %711 = vmatprep.subr.mxu0 0.0
        %712 = vmatpush1.msra.mxu0 0.0
        %713 = vmatprep.subr.mxu0 0.0
        %714 = vmatpush1.msra.mxu0 0.0
        %715 = vmatprep.subr.mxu0 0.0
        %716 = vmatpush1.msra.mxu0 0.0
        %717 = vmatprep.subr.mxu0 0.0
        %718 = vmatpush1.msra.mxu0 %v401
        %719 = vmatprep.subr.mxu0 0.0
        %720 = vmatpush1.msra.mxu0 %v400
        %721 = vmatprep.subr.mxu0 0.0
        %722 = vmatpush2.msra.mxu0 0.0
        %723 = vmatprep.subr.mxu0 0.0
        %724 = vmatpush2.msra.mxu0 0.0
        %725 = vmatprep.subr.mxu0 0.0
        %726 = vmatpush2.msra.mxu0 0.0
        %727 = vmatprep.subr.mxu0 0.0
        %728 = vmatpush2.msra.mxu0 0.0
        %729 = vmatprep.subr.mxu0 0.0
        %730 = vmatpush2.msra.mxu0 0.0
        %731 = vmatprep.subr.mxu0 0.0
        %732 = vmatpush2.msra.mxu0 0.0
        %733 = vmatprep.subr.mxu0 0.0
        %734 = vmatpush2.msra.mxu0 0.0
        %735 = vmatprep.subr.mxu0 0.0
        %736 = vmatpush2.msra.mxu0 0.0
        %737 = vmatprep.subr.mxu0 0.0
        %738 = vmatpush2.msra.mxu0 0.0
        %739 = vmatprep.subr.mxu0 0.0
        %740 = vmatpush2.msra.mxu0 0.0
        %741 = vmatprep.subr.mxu0 0.0
        %742 = vmatpush2.msra.mxu0 0.0
        %743 = vmatprep.subr.mxu0 0.0
        %744 = vmatpush2.msra.mxu0 0.0
        %745 = vmatprep.subr.mxu0 0.0
        %746 = vmatpush2.msra.mxu0 0.0
        %747 = vmatprep.subr.mxu0 0.0
        %748 = vmatpush2.msra.mxu0 0.0
        %749 = vmatprep.subr.mxu0 0.0
        %750 = vmatpush2.msra.mxu0 0.0
        %751 = vmatprep.subr.mxu0 0.0
        %752 = vmatpush2.msra.mxu0 0.0
        %753 = vmatprep.mubr.f32.mxu0 0.0
        %754 = vmatmul.mubr.f32.gmra.mxu0 %v684
        %v755 = vpop.f32.mrf.mxu0
        %v756 = vadd.f32 0.0, %v755
        %v757 = vpop.f32.mrf.mxu0
        %758 = vmatprep.mubr.f32.mxu0 0.0
        %759 = vmatmul.mubr.f32.gmra.mxu0 %v687
        %v760 = vpop.f32.mrf.mxu0
        %v761 = vadd.f32 0.0, %v760
        %v762 = vpop.f32.mrf.mxu0
        %763 = vdwg.mxu0
        %v765 = vsel %vm428, %v519, 0
        %v768 = vsel %vm428, %v520, 0
        %770 = vmatprep.subr.mxu0 0.0
        %771 = vmatpush1.msra.mxu0 0.0
        %772 = vmatprep.subr.mxu0 0.0
        %773 = vmatpush1.msra.mxu0 0.0
        %774 = vmatprep.subr.mxu0 0.0
        %775 = vmatpush1.msra.mxu0 0.0
        %776 = vmatprep.subr.mxu0 0.0
        %777 = vmatpush1.msra.mxu0 0.0
        %778 = vmatprep.subr.mxu0 0.0
        %779 = vmatpush1.msra.mxu0 0.0
        %780 = vmatprep.subr.mxu0 0.0
        %781 = vmatpush1.msra.mxu0 0.0
        %782 = vmatprep.subr.mxu0 0.0
        %783 = vmatpush1.msra.mxu0 0.0
        %784 = vmatprep.subr.mxu0 0.0
        %785 = vmatpush1.msra.mxu0 0.0
        %786 = vmatprep.subr.mxu0 0.0
        %787 = vmatpush1.msra.mxu0 0.0
        %788 = vmatprep.subr.mxu0 0.0
        %789 = vmatpush1.msra.mxu0 0.0
        %790 = vmatprep.subr.mxu0 0.0
        %791 = vmatpush1.msra.mxu0 0.0
        %792 = vmatprep.subr.mxu0 0.0
        %793 = vmatpush1.msra.mxu0 0.0
        %794 = vmatprep.subr.mxu0 0.0
        %795 = vmatpush1.msra.mxu0 0.0
        %796 = vmatprep.subr.mxu0 0.0
        %797 = vmatpush1.msra.mxu0 0.0
        %798 = vmatprep.subr.mxu0 0.0
        %799 = vmatpush1.msra.mxu0 %v403
        %800 = vmatprep.subr.mxu0 0.0
        %801 = vmatpush1.msra.mxu0 %v402
        %802 = vmatprep.subr.mxu0 0.0
        %803 = vmatpush2.msra.mxu0 0.0
        %804 = vmatprep.subr.mxu0 0.0
        %805 = vmatpush2.msra.mxu0 0.0
        %806 = vmatprep.subr.mxu0 0.0
        %807 = vmatpush2.msra.mxu0 0.0
        %808 = vmatprep.subr.mxu0 0.0
        %809 = vmatpush2.msra.mxu0 0.0
        %810 = vmatprep.subr.mxu0 0.0
        %811 = vmatpush2.msra.mxu0 0.0
        %812 = vmatprep.subr.mxu0 0.0
        %813 = vmatpush2.msra.mxu0 0.0
        %814 = vmatprep.subr.mxu0 0.0
        %815 = vmatpush2.msra.mxu0 0.0
        %816 = vmatprep.subr.mxu0 0.0
        %817 = vmatpush2.msra.mxu0 0.0
        %818 = vmatprep.subr.mxu0 0.0
        %819 = vmatpush2.msra.mxu0 0.0
        %820 = vmatprep.subr.mxu0 0.0
        %821 = vmatpush2.msra.mxu0 0.0
        %822 = vmatprep.subr.mxu0 0.0
        %823 = vmatpush2.msra.mxu0 0.0
        %824 = vmatprep.subr.mxu0 0.0
        %825 = vmatpush2.msra.mxu0 0.0
        %826 = vmatprep.subr.mxu0 0.0
        %827 = vmatpush2.msra.mxu0 0.0
        %828 = vmatprep.subr.mxu0 0.0
        %829 = vmatpush2.msra.mxu0 0.0
        %830 = vmatprep.subr.mxu0 0.0
        %831 = vmatpush2.msra.mxu0 0.0
        %832 = vmatprep.subr.mxu0 0.0
        %833 = vmatpush2.msra.mxu0 0.0
        %834 = vmatprep.mubr.f32.mxu0 0.0
        %835 = vmatmul.mubr.f32.gmra.mxu0 %v765
        %v836 = vpop.f32.mrf.mxu0
        %v837 = vadd.f32 0.0, %v836
        %v838 = vpop.f32.mrf.mxu0
        %839 = vmatprep.mubr.f32.mxu0 0.0
        %840 = vmatmul.mubr.f32.gmra.mxu0 %v768
        %v841 = vpop.f32.mrf.mxu0
        %v842 = vadd.f32 0.0, %v841
        %v843 = vpop.f32.mrf.mxu0
        %844 = vdwg.mxu0
        %v845 = vld [vmem:[%s2] sm:$0xff]
        %vm846 = vcmask 64512
        %v848 = vsel %vm846, %v594, 0
        %v851 = vsel %vm846, %v599, 0
        %v854 = vsel %vm846, %v675, 0
        %v857 = vsel %vm846, %v680, 0
        %v860 = vsel %vm846, %v756, 0
        %v863 = vsel %vm846, %v761, 0
        %v866 = vsel %vm846, %v837, 0
        %v869 = vsel %vm846, %v842, 0
        %871 = vmatprep.subr.mxu0 0.0
        %872 = vmatpush1.msra.mxu0 0.0
        %873 = vmatprep.subr.mxu0 0.0
        %874 = vmatpush1.msra.mxu0 0.0
        %875 = vmatprep.subr.mxu0 0.0
        %876 = vmatpush1.msra.mxu0 0.0
        %877 = vmatprep.subr.mxu0 0.0
        %878 = vmatpush1.msra.mxu0 0.0
        %879 = vmatprep.subr.mxu0 0.0
        %880 = vmatpush1.msra.mxu0 0.0
        %881 = vmatprep.subr.mxu0 0.0
        %882 = vmatpush1.msra.mxu0 0.0
        %883 = vmatprep.subr.mxu0 0.0
        %884 = vmatpush1.msra.mxu0 0.0
        %885 = vmatprep.subr.mxu0 0.0
        %886 = vmatpush1.msra.mxu0 0.0
        %887 = vmatprep.subr.mxu0 0.0
        %888 = vmatpush1.msra.mxu0 0.0
        %889 = vmatprep.subr.mxu0 0.0
        %890 = vmatpush1.msra.mxu0 0.0
        %891 = vmatprep.subr.mxu0 0.0
        %892 = vmatpush1.msra.mxu0 0.0
        %893 = vmatprep.subr.mxu0 0.0
        %894 = vmatpush1.msra.mxu0 0.0
        %895 = vmatprep.subr.mxu0 0.0
        %896 = vmatpush1.msra.mxu0 0.0
        %897 = vmatprep.subr.mxu0 0.0
        %898 = vmatpush1.msra.mxu0 0.0
        %899 = vmatprep.subr.mxu0 0.0
        %900 = vmatpush1.msra.mxu0 0.0
        %901 = vmatprep.subr.mxu0 0.0
        %902 = vmatpush1.msra.mxu0 %v845
        %903 = vmatprep.subr.mxu0 0.0
        %904 = vmatpush2.msra.mxu0 0.0
        %905 = vmatprep.subr.mxu0 0.0
        %906 = vmatpush2.msra.mxu0 0.0
        %907 = vmatprep.subr.mxu0 0.0
        %908 = vmatpush2.msra.mxu0 0.0
        %909 = vmatprep.subr.mxu0 0.0
        %910 = vmatpush2.msra.mxu0 0.0
        %911 = vmatprep.subr.mxu0 0.0
        %912 = vmatpush2.msra.mxu0 0.0
        %913 = vmatprep.subr.mxu0 0.0
        %914 = vmatpush2.msra.mxu0 0.0
        %915 = vmatprep.subr.mxu0 0.0
        %916 = vmatpush2.msra.mxu0 0.0
        %917 = vmatprep.subr.mxu0 0.0
        %918 = vmatpush2.msra.mxu0 0.0
        %919 = vmatprep.subr.mxu0 0.0
        %920 = vmatpush2.msra.mxu0 0.0
        %921 = vmatprep.subr.mxu0 0.0
        %922 = vmatpush2.msra.mxu0 0.0
        %923 = vmatprep.subr.mxu0 0.0
        %924 = vmatpush2.msra.mxu0 0.0
        %925 = vmatprep.subr.mxu0 0.0
        %926 = vmatpush2.msra.mxu0 0.0
        %927 = vmatprep.subr.mxu0 0.0
        %928 = vmatpush2.msra.mxu0 0.0
        %929 = vmatprep.subr.mxu0 0.0
        %930 = vmatpush2.msra.mxu0 0.0
        %931 = vmatprep.subr.mxu0 0.0
        %932 = vmatpush2.msra.mxu0 0.0
        %933 = vmatprep.subr.mxu0 0.0
        %934 = vmatpush2.msra.mxu0 0.0
        %935 = vmatprep.mubr.f32.mxu0 0.0
        %936 = vmatmul.mubr.f32.gmra.mxu0 %v848
        %v937 = vpop.f32.mrf.mxu0
        %v938 = vadd.f32 0.0, %v937
        %v939 = vpop.f32.mrf.mxu0
        %940 = vmatprep.mubr.f32.mxu0 0.0
        %941 = vmatmul.mubr.f32.gmra.mxu0 %v851
        %v942 = vpop.f32.mrf.mxu0
        %v943 = vadd.f32 0.0, %v942
        %v944 = vpop.f32.mrf.mxu0
        %945 = vmatprep.mubr.f32.mxu0 0.0
        %946 = vmatmul.mubr.f32.gmra.mxu0 %v854
        %v947 = vpop.f32.mrf.mxu0
        %v948 = vadd.f32 0.0, %v947
        %v949 = vpop.f32.mrf.mxu0
        %950 = vmatprep.mubr.f32.mxu0 0.0
        %951 = vmatmul.mubr.f32.gmra.mxu0 %v857
        %v952 = vpop.f32.mrf.mxu0
        %v953 = vadd.f32 0.0, %v952
        %v954 = vpop.f32.mrf.mxu0
        %955 = vmatprep.mubr.f32.mxu0 0.0
        %956 = vmatmul.mubr.f32.gmra.mxu0 %v860
        %v957 = vpop.f32.mrf.mxu0
        %v958 = vadd.f32 0.0, %v957
        %v959 = vpop.f32.mrf.mxu0
        %960 = vmatprep.mubr.f32.mxu0 0.0
        %961 = vmatmul.mubr.f32.gmra.mxu0 %v863
        %v962 = vpop.f32.mrf.mxu0
        %v963 = vadd.f32 0.0, %v962
        %v964 = vpop.f32.mrf.mxu0
        %965 = vmatprep.mubr.f32.mxu0 0.0
        %966 = vmatmul.mubr.f32.gmra.mxu0 %v866
        %v967 = vpop.f32.mrf.mxu0
        %v968 = vadd.f32 0.0, %v967
        %v969 = vpop.f32.mrf.mxu0
        %970 = vmatprep.mubr.f32.mxu0 0.0
        %971 = vmatmul.mubr.f32.gmra.mxu0 %v869
        %v972 = vpop.f32.mrf.mxu0
        %v973 = vadd.f32 0.0, %v972
        %v974 = vpop.f32.mrf.mxu0
        %975 = vdwg.mxu0
        %vm976 = vcmp.gt.f32.partialorder %v938, 0.0
        %vm977 = vcmp.gt.f32.partialorder %v943, 0.0
        %vm978 = vcmp.gt.f32.partialorder %v948, 0.0
        %vm979 = vcmp.gt.f32.partialorder %v953, 0.0
        %vm980 = vcmp.gt.f32.partialorder %v958, 0.0
        %vm981 = vcmp.gt.f32.partialorder %v963, 0.0
        %vm982 = vcmp.gt.f32.partialorder %v968, 0.0
        %vm983 = vcmp.gt.f32.partialorder %v973, 0.0
        %v984 = vmul.f32 %v938, 0.01
        %v985 = vmul.f32 %v943, 0.01
        %v986 = vmul.f32 %v948, 0.01
        %v987 = vmul.f32 %v953, 0.01
        %v988 = vmul.f32 %v958, 0.01
        %v989 = vmul.f32 %v963, 0.01
        %v990 = vmul.f32 %v968, 0.01
        %v991 = vmul.f32 %v973, 0.01
        %v992 = vsel %vm976, %v938, %v984
        %v993 = vsel %vm977, %v943, %v985
        %v994 = vsel %vm978, %v948, %v986
        %v995 = vsel %vm979, %v953, %v987
        %v996 = vsel %vm980, %v958, %v988
        %v997 = vsel %vm981, %v963, %v989
        %v998 = vsel %vm982, %v968, %v990
        %v999 = vsel %vm983, %v973, %v991
        %v1000 = vsel %vm428, %v992, 0.0
        %v1001 = vsel %vm428, %v993, 0.0
        %v1002 = vadd.f32 %v1000, %v1001
        %v1003 = vrot.slane %v1002, 4
        %v1004 = vadd.f32 %v1002, %v1003
        %v1005 = vrot.slane %v1004, 2
        %v1006 = vadd.f32 %v1004, %v1005
        %v1007 = vrot.slane %v1006, 1
        %v1008 = vadd.f32 %v1006, %v1007
        %v1009 = vsel %vm428, %v994, 0.0
        %v1010 = vsel %vm428, %v995, 0.0
        %v1011 = vadd.f32 %v1009, %v1010
        %v1012 = vrot.slane %v1011, 4
        %v1013 = vadd.f32 %v1011, %v1012
        %v1014 = vrot.slane %v1013, 2
        %v1015 = vadd.f32 %v1013, %v1014
        %v1016 = vrot.slane %v1015, 1
        %v1017 = vadd.f32 %v1015, %v1016
        %v1018 = vsel %vm428, %v996, 0.0
        %v1019 = vsel %vm428, %v997, 0.0
        %v1020 = vadd.f32 %v1018, %v1019
        %v1021 = vrot.slane %v1020, 4
        %v1022 = vadd.f32 %v1020, %v1021
        %v1023 = vrot.slane %v1022, 2
        %v1024 = vadd.f32 %v1022, %v1023
        %v1025 = vrot.slane %v1024, 1
        %v1026 = vadd.f32 %v1024, %v1025
        %v1027 = vsel %vm428, %v998, 0.0
        %v1028 = vsel %vm428, %v999, 0.0
        %v1029 = vadd.f32 %v1027, %v1028
        %v1030 = vrot.slane %v1029, 4
        %v1031 = vadd.f32 %v1029, %v1030
        %v1032 = vrot.slane %v1031, 2
        %v1033 = vadd.f32 %v1031, %v1032
        %v1034 = vrot.slane %v1033, 1
        %v1035 = vadd.f32 %v1033, %v1034
        %v1036 = vrcp.pop 16.0
        %v1037 = vmul.f32 %v1008, %v1036
        %v1038 = vmul.f32 %v1017, %v1036
        %v1039 = vmul.f32 %v1026, %v1036
        %v1040 = vmul.f32 %v1035, %v1036
        %v1041 = vld [vmem:[%s5] sm:$0x1]
        %v1042 = vmul.f32 %v1041, %v1037
        %v1043 = vmul.f32 %v1041, %v1038
        %v1044 = vmul.f32 %v1041, %v1039
        %v1045 = vmul.f32 %v1041, %v1040
        %v1050 = vlaneseq
        %v1051 = vshrl.u32 %v1050, 7
        %v1052 = vsub.s32 0, %v1051
        %v1053 = vrot.slane %v1042, %v1052
        %v1054 = vlaneseq
        %v1055 = vshrl.u32 %v1054, 7
        %v1056 = vsub.s32 0, %v1055
        %v1057 = vrot.slane %v1043, %v1056
        %v1058 = vlaneseq
        %v1059 = vshrl.u32 %v1058, 7
        %v1060 = vsub.s32 0, %v1059
        %v1061 = vrot.slane %v1044, %v1060
        %v1062 = vlaneseq
        %v1063 = vshrl.u32 %v1062, 7
        %v1064 = vsub.s32 0, %v1063
        %v1065 = vrot.slane %v1045, %v1064
        %v1070 = vsub.f32 %v992, %v1053
        %v1071 = vsub.f32 %v993, %v1053
        %v1072 = vsub.f32 %v994, %v1057
        %v1073 = vsub.f32 %v995, %v1057
        %v1074 = vsub.f32 %v996, %v1061
        %v1075 = vsub.f32 %v997, %v1061
        %v1076 = vsub.f32 %v998, %v1065
        %v1077 = vsub.f32 %v999, %v1065
        %v1078 = vmul.f32 %v1070, %v1070
        %v1079 = vmul.f32 %v1071, %v1071
        %v1080 = vmul.f32 %v1072, %v1072
        %v1081 = vmul.f32 %v1073, %v1073
        %v1082 = vmul.f32 %v1074, %v1074
        %v1083 = vmul.f32 %v1075, %v1075
        %v1084 = vmul.f32 %v1076, %v1076
        %v1085 = vmul.f32 %v1077, %v1077
        %v1086 = vsel %vm428, %v1078, 0.0
        %v1087 = vsel %vm428, %v1079, 0.0
        %v1088 = vadd.f32 %v1086, %v1087
        %v1089 = vrot.slane %v1088, 4
        %v1090 = vadd.f32 %v1088, %v1089
        %v1091 = vrot.slane %v1090, 2
        %v1092 = vadd.f32 %v1090, %v1091
        %v1093 = vrot.slane %v1092, 1
        %v1094 = vadd.f32 %v1092, %v1093
        %v1095 = vsel %vm428, %v1080, 0.0
        %v1096 = vsel %vm428, %v1081, 0.0
        %v1097 = vadd.f32 %v1095, %v1096
        %v1098 = vrot.slane %v1097, 4
        %v1099 = vadd.f32 %v1097, %v1098
        %v1100 = vrot.slane %v1099, 2
        %v1101 = vadd.f32 %v1099, %v1100
        %v1102 = vrot.slane %v1101, 1
        %v1103 = vadd.f32 %v1101, %v1102
        %v1104 = vsel %vm428, %v1082, 0.0
        %v1105 = vsel %vm428, %v1083, 0.0
        %v1106 = vadd.f32 %v1104, %v1105
        %v1107 = vrot.slane %v1106, 4
        %v1108 = vadd.f32 %v1106, %v1107
        %v1109 = vrot.slane %v1108, 2
        %v1110 = vadd.f32 %v1108, %v1109
        %v1111 = vrot.slane %v1110, 1
        %v1112 = vadd.f32 %v1110, %v1111
        %v1113 = vsel %vm428, %v1084, 0.0
        %v1114 = vsel %vm428, %v1085, 0.0
        %v1115 = vadd.f32 %v1113, %v1114
        %v1116 = vrot.slane %v1115, 4
        %v1117 = vadd.f32 %v1115, %v1116
        %v1118 = vrot.slane %v1117, 2
        %v1119 = vadd.f32 %v1117, %v1118
        %v1120 = vrot.slane %v1119, 1
        %v1121 = vadd.f32 %v1119, %v1120
        %v1122 = vmul.f32 %v1094, %v1036
        %v1123 = vmul.f32 %v1103, %v1036
        %v1124 = vmul.f32 %v1112, %v1036
        %v1125 = vmul.f32 %v1121, %v1036
        %v1126 = vadd.f32 %v1122, 1e-05
        %v1127 = vadd.f32 %v1123, 1e-05
        %v1128 = vadd.f32 %v1124, 1e-05
        %v1129 = vadd.f32 %v1125, 1e-05
        %v1130 = vrsqrt.pop %v1126
        %v1131 = vrsqrt.pop %v1127
        %v1132 = vrsqrt.pop %v1128
        %v1133 = vrsqrt.pop %v1129
        %v1134 = vmul.f32 %v1070, %v1130
        %v1135 = vmul.f32 %v1071, %v1130
        %v1136 = vmul.f32 %v1072, %v1131
        %v1137 = vmul.f32 %v1073, %v1131
        %v1138 = vmul.f32 %v1074, %v1132
        %v1139 = vmul.f32 %v1075, %v1132
        %v1140 = vmul.f32 %v1076, %v1133
        %v1141 = vmul.f32 %v1077, %v1133
        %v1142 = vld [vmem:[%s3] sm:$0x1]
        %v1144 = vlaneseq
        %v1145 = vshrl.u32 %v1144, 7
        %v1146 = vsub.s32 0, %v1145
        %v1147 = vrot.slane %v1142, %v1146
        %v1149 = vmul.f32 %v1134, %v1147
        %v1150 = vmul.f32 %v1135, %v1147
        %v1151 = vmul.f32 %v1136, %v1147
        %v1152 = vmul.f32 %v1137, %v1147
        %v1153 = vmul.f32 %v1138, %v1147
        %v1154 = vmul.f32 %v1139, %v1147
        %v1155 = vmul.f32 %v1140, %v1147
        %v1156 = vmul.f32 %v1141, %v1147
        %v1157 = vld [vmem:[%s4] sm:$0x1]
        %v1159 = vlaneseq
        %v1160 = vshrl.u32 %v1159, 7
        %v1161 = vsub.s32 0, %v1160
        %v1162 = vrot.slane %v1157, %v1161
        %v1164 = vadd.f32 %v1149, %v1162
        %v1165 = vadd.f32 %v1150, %v1162
        %v1166 = vadd.f32 %v1151, %v1162
        %v1167 = vadd.f32 %v1152, %v1162
        %v1168 = vadd.f32 %v1153, %v1162
        %v1169 = vadd.f32 %v1154, %v1162
        %v1170 = vadd.f32 %v1155, %v1162
        %v1171 = vadd.f32 %v1156, %v1162
        %v1172 = vsel %vm428, %v1164, 0.0
        %v1173 = vsel %vm428, %v1165, 0.0
        %v1174 = vadd.f32 %v1172, %v1173
        %v1175 = vrot.slane %v1174, 4
        %v1176 = vadd.f32 %v1174, %v1175
        %v1177 = vrot.slane %v1176, 2
        %v1178 = vadd.f32 %v1176, %v1177
        %v1179 = vrot.slane %v1178, 1
        %v1180 = vadd.f32 %v1178, %v1179
        %v1181 = vsel %vm428, %v1166, 0.0
        %v1182 = vsel %vm428, %v1167, 0.0
        %v1183 = vadd.f32 %v1181, %v1182
        %v1184 = vrot.slane %v1183, 4
        %v1185 = vadd.f32 %v1183, %v1184
        %v1186 = vrot.slane %v1185, 2
        %v1187 = vadd.f32 %v1185, %v1186
        %v1188 = vrot.slane %v1187, 1
        %v1189 = vadd.f32 %v1187, %v1188
        %v1190 = vsel %vm428, %v1168, 0.0
        %v1191 = vsel %vm428, %v1169, 0.0
        %v1192 = vadd.f32 %v1190, %v1191
        %v1193 = vrot.slane %v1192, 4
        %v1194 = vadd.f32 %v1192, %v1193
        %v1195 = vrot.slane %v1194, 2
        %v1196 = vadd.f32 %v1194, %v1195
        %v1197 = vrot.slane %v1196, 1
        %v1198 = vadd.f32 %v1196, %v1197
        %v1199 = vsel %vm428, %v1170, 0.0
        %v1200 = vsel %vm428, %v1171, 0.0
        %v1201 = vadd.f32 %v1199, %v1200
        %v1202 = vrot.slane %v1201, 4
        %v1203 = vadd.f32 %v1201, %v1202
        %v1204 = vrot.slane %v1203, 2
        %v1205 = vadd.f32 %v1203, %v1204
        %v1206 = vrot.slane %v1205, 1
        %v1207 = vadd.f32 %v1205, %v1206
        %v1208 = vmul.f32 %v1180, %v1036
        %v1209 = vmul.f32 %v1189, %v1036
        %v1210 = vmul.f32 %v1198, %v1036
        %v1211 = vmul.f32 %v1207, %v1036
        %v1212 = vsel %vm428, %v1164, -inf
        %v1213 = vsel %vm428, %v1165, -inf
        %v1214 = vmax.f32 %v1212, %v1213
        %v1215 = vrot.slane %v1214, 4
        %v1216 = vmax.f32 %v1214, %v1215
        %v1217 = vrot.slane %v1216, 2
        %v1218 = vmax.f32 %v1216, %v1217
        %v1219 = vrot.slane %v1218, 1
        %v1220 = vmax.f32 %v1218, %v1219
        %v1221 = vsel %vm428, %v1166, -inf
        %v1222 = vsel %vm428, %v1167, -inf
        %v1223 = vmax.f32 %v1221, %v1222
        %v1224 = vrot.slane %v1223, 4
        %v1225 = vmax.f32 %v1223, %v1224
        %v1226 = vrot.slane %v1225, 2
        %v1227 = vmax.f32 %v1225, %v1226
        %v1228 = vrot.slane %v1227, 1
        %v1229 = vmax.f32 %v1227, %v1228
        %v1230 = vsel %vm428, %v1168, -inf
        %v1231 = vsel %vm428, %v1169, -inf
        %v1232 = vmax.f32 %v1230, %v1231
        %v1233 = vrot.slane %v1232, 4
        %v1234 = vmax.f32 %v1232, %v1233
        %v1235 = vrot.slane %v1234, 2
        %v1236 = vmax.f32 %v1234, %v1235
        %v1237 = vrot.slane %v1236, 1
        %v1238 = vmax.f32 %v1236, %v1237
        %v1239 = vsel %vm428, %v1170, -inf
        %v1240 = vsel %vm428, %v1171, -inf
        %v1241 = vmax.f32 %v1239, %v1240
        %v1242 = vrot.slane %v1241, 4
        %v1243 = vmax.f32 %v1241, %v1242
        %v1244 = vrot.slane %v1243, 2
        %v1245 = vmax.f32 %v1243, %v1244
        %v1246 = vrot.slane %v1245, 1
        %v1247 = vmax.f32 %v1245, %v1246
        %v1248 = vsel %vm428, %v1164, inf
        %v1249 = vsel %vm428, %v1165, inf
        %v1250 = vmin.f32 %v1248, %v1249
        %v1251 = vrot.slane %v1250, 4
        %v1252 = vmin.f32 %v1250, %v1251
        %v1253 = vrot.slane %v1252, 2
        %v1254 = vmin.f32 %v1252, %v1253
        %v1255 = vrot.slane %v1254, 1
        %v1256 = vmin.f32 %v1254, %v1255
        %v1257 = vsel %vm428, %v1166, inf
        %v1258 = vsel %vm428, %v1167, inf
        %v1259 = vmin.f32 %v1257, %v1258
        %v1260 = vrot.slane %v1259, 4
        %v1261 = vmin.f32 %v1259, %v1260
        %v1262 = vrot.slane %v1261, 2
        %v1263 = vmin.f32 %v1261, %v1262
        %v1264 = vrot.slane %v1263, 1
        %v1265 = vmin.f32 %v1263, %v1264
        %v1266 = vsel %vm428, %v1168, inf
        %v1267 = vsel %vm428, %v1169, inf
        %v1268 = vmin.f32 %v1266, %v1267
        %v1269 = vrot.slane %v1268, 4
        %v1270 = vmin.f32 %v1268, %v1269
        %v1271 = vrot.slane %v1270, 2
        %v1272 = vmin.f32 %v1270, %v1271
        %v1273 = vrot.slane %v1272, 1
        %v1274 = vmin.f32 %v1272, %v1273
        %v1275 = vsel %vm428, %v1170, inf
        %v1276 = vsel %vm428, %v1171, inf
        %v1277 = vmin.f32 %v1275, %v1276
        %v1278 = vrot.slane %v1277, 4
        %v1279 = vmin.f32 %v1277, %v1278
        %v1280 = vrot.slane %v1279, 2
        %v1281 = vmin.f32 %v1279, %v1280
        %v1282 = vrot.slane %v1281, 1
        %v1283 = vmin.f32 %v1281, %v1282
        %v1284 = vld [vmem:[%s6] sm:$0xff]
        %v1285 = vld [vmem:[%s6 + $0x8] sm:$0xff]
        %v1286 = vld [vmem:[%s6 + $0x10] sm:$0xff]
        %v1287 = vld [vmem:[%s6 + $0x18] sm:$0xff]
        %vm1292 = vcmask 1041409
        %v1293 = vsel %vm1292, %v1229, %v1220
        %vm1294 = vcmask 1042434
        %v1295 = vsel %vm1294, %v1238, %v1293
        %vm1296 = vcmask 1043459
        %v1297 = vsel %vm1296, %v1247, %v1295
        %v1298 = vsel %vm428, %v1297, 0
        %1300 = vmatprep.subr.mxu0 0.0
        %1301 = vmatpush1.msra.mxu0 0.0
        %1302 = vmatprep.subr.mxu0 0.0
        %1303 = vmatpush1.msra.mxu0 0.0
        %1304 = vmatprep.subr.mxu0 0.0
        %1305 = vmatpush1.msra.mxu0 0.0
        %1306 = vmatprep.subr.mxu0 0.0
        %1307 = vmatpush1.msra.mxu0 0.0
        %1308 = vmatprep.subr.mxu0 0.0
        %1309 = vmatpush1.msra.mxu0 0.0
        %1310 = vmatprep.subr.mxu0 0.0
        %1311 = vmatpush1.msra.mxu0 0.0
        %1312 = vmatprep.subr.mxu0 0.0
        %1313 = vmatpush1.msra.mxu0 0.0
        %1314 = vmatprep.subr.mxu0 0.0
        %1315 = vmatpush1.msra.mxu0 0.0
        %1316 = vmatprep.subr.mxu0 0.0
        %1317 = vmatpush1.msra.mxu0 0.0
        %1318 = vmatprep.subr.mxu0 0.0
        %1319 = vmatpush1.msra.mxu0 0.0
        %1320 = vmatprep.subr.mxu0 0.0
        %1321 = vmatpush1.msra.mxu0 0.0
        %1322 = vmatprep.subr.mxu0 0.0
        %1323 = vmatpush1.msra.mxu0 0.0
        %1324 = vmatprep.subr.mxu0 0.0
        %1325 = vmatpush1.msra.mxu0 0.0
        %1326 = vmatprep.subr.mxu0 0.0
        %1327 = vmatpush1.msra.mxu0 0.0
        %1328 = vmatprep.subr.mxu0 0.0
        %1329 = vmatpush1.msra.mxu0 %v1287
        %1330 = vmatprep.subr.mxu0 0.0
        %1331 = vmatpush1.msra.mxu0 %v1286
        %1332 = vmatprep.subr.mxu0 0.0
        %1333 = vmatpush2.msra.mxu0 0.0
        %1334 = vmatprep.subr.mxu0 0.0
        %1335 = vmatpush2.msra.mxu0 0.0
        %1336 = vmatprep.subr.mxu0 0.0
        %1337 = vmatpush2.msra.mxu0 0.0
        %1338 = vmatprep.subr.mxu0 0.0
        %1339 = vmatpush2.msra.mxu0 0.0
        %1340 = vmatprep.subr.mxu0 0.0
        %1341 = vmatpush2.msra.mxu0 0.0
        %1342 = vmatprep.subr.mxu0 0.0
        %1343 = vmatpush2.msra.mxu0 0.0
        %1344 = vmatprep.subr.mxu0 0.0
        %1345 = vmatpush2.msra.mxu0 0.0
        %1346 = vmatprep.subr.mxu0 0.0
        %1347 = vmatpush2.msra.mxu0 0.0
        %1348 = vmatprep.subr.mxu0 0.0
        %1349 = vmatpush2.msra.mxu0 0.0
        %1350 = vmatprep.subr.mxu0 0.0
        %1351 = vmatpush2.msra.mxu0 0.0
        %1352 = vmatprep.subr.mxu0 0.0
        %1353 = vmatpush2.msra.mxu0 0.0
        %1354 = vmatprep.subr.mxu0 0.0
        %1355 = vmatpush2.msra.mxu0 0.0
        %1356 = vmatprep.subr.mxu0 0.0
        %1357 = vmatpush2.msra.mxu0 0.0
        %1358 = vmatprep.subr.mxu0 0.0
        %1359 = vmatpush2.msra.mxu0 0.0
        %1360 = vmatprep.subr.mxu0 0.0
        %1361 = vmatpush2.msra.mxu0 0.0
        %1362 = vmatprep.subr.mxu0 0.0
        %1363 = vmatpush2.msra.mxu0 0.0
        %1364 = vmatprep.mubr.f32.mxu0 0.0
        %1365 = vmatmul.mubr.f32.gmra.mxu0 %v1298
        %v1366 = vpop.f32.mrf.mxu0
        %v1367 = vadd.f32 0.0, %v1366
        %v1368 = vpop.f32.mrf.mxu0
        %1369 = vdwg.mxu0
        %v1374 = vsel %vm1292, %v1209, %v1208
        %v1375 = vsel %vm1294, %v1210, %v1374
        %v1376 = vsel %vm1296, %v1211, %v1375
        %v1377 = vsel %vm428, %v1376, 0
        %1379 = vmatprep.subr.mxu0 0.0
        %1380 = vmatpush1.msra.mxu0 0.0
        %1381 = vmatprep.subr.mxu0 0.0
        %1382 = vmatpush1.msra.mxu0 0.0
        %1383 = vmatprep.subr.mxu0 0.0
        %1384 = vmatpush1.msra.mxu0 0.0
        %1385 = vmatprep.subr.mxu0 0.0
        %1386 = vmatpush1.msra.mxu0 0.0
        %1387 = vmatprep.subr.mxu0 0.0
        %1388 = vmatpush1.msra.mxu0 0.0
        %1389 = vmatprep.subr.mxu0 0.0
        %1390 = vmatpush1.msra.mxu0 0.0
        %1391 = vmatprep.subr.mxu0 0.0
        %1392 = vmatpush1.msra.mxu0 0.0
        %1393 = vmatprep.subr.mxu0 0.0
        %1394 = vmatpush1.msra.mxu0 0.0
        %1395 = vmatprep.subr.mxu0 0.0
        %1396 = vmatpush1.msra.mxu0 0.0
        %1397 = vmatprep.subr.mxu0 0.0
        %1398 = vmatpush1.msra.mxu0 0.0
        %1399 = vmatprep.subr.mxu0 0.0
        %1400 = vmatpush1.msra.mxu0 0.0
        %1401 = vmatprep.subr.mxu0 0.0
        %1402 = vmatpush1.msra.mxu0 0.0
        %1403 = vmatprep.subr.mxu0 0.0
        %1404 = vmatpush1.msra.mxu0 0.0
        %1405 = vmatprep.subr.mxu0 0.0
        %1406 = vmatpush1.msra.mxu0 0.0
        %1407 = vmatprep.subr.mxu0 0.0
        %1408 = vmatpush1.msra.mxu0 %v1285
        %1409 = vmatprep.subr.mxu0 0.0
        %1410 = vmatpush1.msra.mxu0 %v1284
        %1411 = vmatprep.subr.mxu0 0.0
        %1412 = vmatpush2.msra.mxu0 0.0
        %1413 = vmatprep.subr.mxu0 0.0
        %1414 = vmatpush2.msra.mxu0 0.0
        %1415 = vmatprep.subr.mxu0 0.0
        %1416 = vmatpush2.msra.mxu0 0.0
        %1417 = vmatprep.subr.mxu0 0.0
        %1418 = vmatpush2.msra.mxu0 0.0
        %1419 = vmatprep.subr.mxu0 0.0
        %1420 = vmatpush2.msra.mxu0 0.0
        %1421 = vmatprep.subr.mxu0 0.0
        %1422 = vmatpush2.msra.mxu0 0.0
        %1423 = vmatprep.subr.mxu0 0.0
        %1424 = vmatpush2.msra.mxu0 0.0
        %1425 = vmatprep.subr.mxu0 0.0
        %1426 = vmatpush2.msra.mxu0 0.0
        %1427 = vmatprep.subr.mxu0 0.0
        %1428 = vmatpush2.msra.mxu0 0.0
        %1429 = vmatprep.subr.mxu0 0.0
        %1430 = vmatpush2.msra.mxu0 0.0
        %1431 = vmatprep.subr.mxu0 0.0
        %1432 = vmatpush2.msra.mxu0 0.0
        %1433 = vmatprep.subr.mxu0 0.0
        %1434 = vmatpush2.msra.mxu0 0.0
        %1435 = vmatprep.subr.mxu0 0.0
        %1436 = vmatpush2.msra.mxu0 0.0
        %1437 = vmatprep.subr.mxu0 0.0
        %1438 = vmatpush2.msra.mxu0 0.0
        %1439 = vmatprep.subr.mxu0 0.0
        %1440 = vmatpush2.msra.mxu0 0.0
        %1441 = vmatprep.subr.mxu0 0.0
        %1442 = vmatpush2.msra.mxu0 0.0
        %1443 = vmatprep.mubr.f32.mxu0 0.0
        %1444 = vmatmul.mubr.f32.gmra.mxu0 %v1377
        %v1445 = vpop.f32.mrf.mxu0
        %v1446 = vadd.f32 %v1367, %v1445
        %v1447 = vpop.f32.mrf.mxu0
        %1448 = vdwg.mxu0
        %v1449 = vld [vmem:[%s6 + $0x20] sm:$0xff]
        %v1450 = vld [vmem:[%s6 + $0x28] sm:$0xff]
        %v1455 = vsel %vm1292, %v1265, %v1256
        %v1456 = vsel %vm1294, %v1274, %v1455
        %v1457 = vsel %vm1296, %v1283, %v1456
        %v1458 = vsel %vm428, %v1457, 0
        %1460 = vmatprep.subr.mxu0 0.0
        %1461 = vmatpush1.msra.mxu0 0.0
        %1462 = vmatprep.subr.mxu0 0.0
        %1463 = vmatpush1.msra.mxu0 0.0
        %1464 = vmatprep.subr.mxu0 0.0
        %1465 = vmatpush1.msra.mxu0 0.0
        %1466 = vmatprep.subr.mxu0 0.0
        %1467 = vmatpush1.msra.mxu0 0.0
        %1468 = vmatprep.subr.mxu0 0.0
        %1469 = vmatpush1.msra.mxu0 0.0
        %1470 = vmatprep.subr.mxu0 0.0
        %1471 = vmatpush1.msra.mxu0 0.0
        %1472 = vmatprep.subr.mxu0 0.0
        %1473 = vmatpush1.msra.mxu0 0.0
        %1474 = vmatprep.subr.mxu0 0.0
        %1475 = vmatpush1.msra.mxu0 0.0
        %1476 = vmatprep.subr.mxu0 0.0
        %1477 = vmatpush1.msra.mxu0 0.0
        %1478 = vmatprep.subr.mxu0 0.0
        %1479 = vmatpush1.msra.mxu0 0.0
        %1480 = vmatprep.subr.mxu0 0.0
        %1481 = vmatpush1.msra.mxu0 0.0
        %1482 = vmatprep.subr.mxu0 0.0
        %1483 = vmatpush1.msra.mxu0 0.0
        %1484 = vmatprep.subr.mxu0 0.0
        %1485 = vmatpush1.msra.mxu0 0.0
        %1486 = vmatprep.subr.mxu0 0.0
        %1487 = vmatpush1.msra.mxu0 0.0
        %1488 = vmatprep.subr.mxu0 0.0
        %1489 = vmatpush1.msra.mxu0 %v1450
        %1490 = vmatprep.subr.mxu0 0.0
        %1491 = vmatpush1.msra.mxu0 %v1449
        %1492 = vmatprep.subr.mxu0 0.0
        %1493 = vmatpush2.msra.mxu0 0.0
        %1494 = vmatprep.subr.mxu0 0.0
        %1495 = vmatpush2.msra.mxu0 0.0
        %1496 = vmatprep.subr.mxu0 0.0
        %1497 = vmatpush2.msra.mxu0 0.0
        %1498 = vmatprep.subr.mxu0 0.0
        %1499 = vmatpush2.msra.mxu0 0.0
        %1500 = vmatprep.subr.mxu0 0.0
        %1501 = vmatpush2.msra.mxu0 0.0
        %1502 = vmatprep.subr.mxu0 0.0
        %1503 = vmatpush2.msra.mxu0 0.0
        %1504 = vmatprep.subr.mxu0 0.0
        %1505 = vmatpush2.msra.mxu0 0.0
        %1506 = vmatprep.subr.mxu0 0.0
        %1507 = vmatpush2.msra.mxu0 0.0
        %1508 = vmatprep.subr.mxu0 0.0
        %1509 = vmatpush2.msra.mxu0 0.0
        %1510 = vmatprep.subr.mxu0 0.0
        %1511 = vmatpush2.msra.mxu0 0.0
        %1512 = vmatprep.subr.mxu0 0.0
        %1513 = vmatpush2.msra.mxu0 0.0
        %1514 = vmatprep.subr.mxu0 0.0
        %1515 = vmatpush2.msra.mxu0 0.0
        %1516 = vmatprep.subr.mxu0 0.0
        %1517 = vmatpush2.msra.mxu0 0.0
        %1518 = vmatprep.subr.mxu0 0.0
        %1519 = vmatpush2.msra.mxu0 0.0
        %1520 = vmatprep.subr.mxu0 0.0
        %1521 = vmatpush2.msra.mxu0 0.0
        %1522 = vmatprep.subr.mxu0 0.0
        %1523 = vmatpush2.msra.mxu0 0.0
        %1524 = vmatprep.mubr.f32.mxu0 0.0
        %1525 = vmatmul.mubr.f32.gmra.mxu0 %v1458
        %v1526 = vpop.f32.mrf.mxu0
        %v1527 = vadd.f32 0.0, %v1526
        %v1528 = vpop.f32.mrf.mxu0
        %1529 = vdwg.mxu0
        %v1530 = vadd.f32 %v1446, %v1527
        %v1531 = vld [vmem:[%s7] sm:$0x1]
        %v1533 = vlaneseq
        %v1534 = vshrl.u32 %v1533, 7
        %v1535 = vsub.s32 0, %v1534
        %v1536 = vrot.slane %v1531, %v1535
        %v1538 = vadd.f32 %v1530, %v1536
        %v1539 = vmax.f32 %v1538, 0.0
        %v1540 = vld [vmem:[%s8] sm:$0xff]
        %v1541 = vld [vmem:[%s8 + $0x8] sm:$0xff]
        %v1542 = vld [vmem:[%s8 + $0x10] sm:$0xff]
        %v1543 = vld [vmem:[%s8 + $0x18] sm:$0xff]
        %v1544 = vld [vmem:[%s9] sm:$0x1]
        %v1546 = vlaneseq
        %v1547 = vshrl.u32 %v1546, 7
        %v1548 = vsub.s32 0, %v1547
        %v1549 = vrot.slane %v1544, %v1548
        %vm1551 = vcmask 261120
        %v1553 = vsel %vm1551, %v1539, 0
        %1555 = vmatprep.subr.mxu0 0.0
        %1556 = vmatpush1.msra.mxu0 0.0
        %1557 = vmatprep.subr.mxu0 0.0
        %1558 = vmatpush1.msra.mxu0 0.0
        %1559 = vmatprep.subr.mxu0 0.0
        %1560 = vmatpush1.msra.mxu0 0.0
        %1561 = vmatprep.subr.mxu0 0.0
        %1562 = vmatpush1.msra.mxu0 0.0
        %1563 = vmatprep.subr.mxu0 0.0
        %1564 = vmatpush1.msra.mxu0 0.0
        %1565 = vmatprep.subr.mxu0 0.0
        %1566 = vmatpush1.msra.mxu0 0.0
        %1567 = vmatprep.subr.mxu0 0.0
        %1568 = vmatpush1.msra.mxu0 0.0
        %1569 = vmatprep.subr.mxu0 0.0
        %1570 = vmatpush1.msra.mxu0 0.0
        %1571 = vmatprep.subr.mxu0 0.0
        %1572 = vmatpush1.msra.mxu0 0.0
        %1573 = vmatprep.subr.mxu0 0.0
        %1574 = vmatpush1.msra.mxu0 0.0
        %1575 = vmatprep.subr.mxu0 0.0
        %1576 = vmatpush1.msra.mxu0 0.0
        %1577 = vmatprep.subr.mxu0 0.0
        %1578 = vmatpush1.msra.mxu0 0.0
        %1579 = vmatprep.subr.mxu0 0.0
        %1580 = vmatpush1.msra.mxu0 %v1543
        %1581 = vmatprep.subr.mxu0 0.0
        %1582 = vmatpush1.msra.mxu0 %v1542
        %1583 = vmatprep.subr.mxu0 0.0
        %1584 = vmatpush1.msra.mxu0 %v1541
        %1585 = vmatprep.subr.mxu0 0.0
        %1586 = vmatpush1.msra.mxu0 %v1540
        %1587 = vmatprep.subr.mxu0 0.0
        %1588 = vmatpush2.msra.mxu0 0.0
        %1589 = vmatprep.subr.mxu0 0.0
        %1590 = vmatpush2.msra.mxu0 0.0
        %1591 = vmatprep.subr.mxu0 0.0
        %1592 = vmatpush2.msra.mxu0 0.0
        %1593 = vmatprep.subr.mxu0 0.0
        %1594 = vmatpush2.msra.mxu0 0.0
        %1595 = vmatprep.subr.mxu0 0.0
        %1596 = vmatpush2.msra.mxu0 0.0
        %1597 = vmatprep.subr.mxu0 0.0
        %1598 = vmatpush2.msra.mxu0 0.0
        %1599 = vmatprep.subr.mxu0 0.0
        %1600 = vmatpush2.msra.mxu0 0.0
        %1601 = vmatprep.subr.mxu0 0.0
        %1602 = vmatpush2.msra.mxu0 0.0
        %1603 = vmatprep.subr.mxu0 0.0
        %1604 = vmatpush2.msra.mxu0 0.0
        %1605 = vmatprep.subr.mxu0 0.0
        %1606 = vmatpush2.msra.mxu0 0.0
        %1607 = vmatprep.subr.mxu0 0.0
        %1608 = vmatpush2.msra.mxu0 0.0
        %1609 = vmatprep.subr.mxu0 0.0
        %1610 = vmatpush2.msra.mxu0 0.0
        %1611 = vmatprep.subr.mxu0 0.0
        %1612 = vmatpush2.msra.mxu0 0.0
        %1613 = vmatprep.subr.mxu0 0.0
        %1614 = vmatpush2.msra.mxu0 0.0
        %1615 = vmatprep.subr.mxu0 0.0
        %1616 = vmatpush2.msra.mxu0 0.0
        %1617 = vmatprep.subr.mxu0 0.0
        %1618 = vmatpush2.msra.mxu0 0.0
        %1619 = vmatprep.mubr.f32.mxu0 0.0
        %1620 = vmatmul.mubr.f32.gmra.mxu0 %v1553
        %v1621 = vpop.f32.mrf.mxu0
        %v1622 = vadd.f32 %v1549, %v1621
        %v1623 = vpop.f32.mrf.mxu0
        %1624 = vdwg.mxu0
        %1625 = vxpose.xlu0.b32.start [1/16] %v1622, 128
        %1626 = vxpose.xlu0.b32.cont [2/16] 0.0, 128
        %1627 = vxpose.xlu0.b32.cont [3/16] 0.0, 128
        %1628 = vxpose.xlu0.b32.cont [4/16] 0.0, 128
        %1629 = vxpose.xlu0.b32.cont [5/16] 0.0, 128
        %1630 = vxpose.xlu0.b32.cont [6/16] 0.0, 128
        %1631 = vxpose.xlu0.b32.cont [7/16] 0.0, 128
        %1632 = vxpose.xlu0.b32.cont [8/16] 0.0, 128
        %1633 = vxpose.xlu0.b32.cont [9/16] 0.0, 128
        %1634 = vxpose.xlu0.b32.cont [10/16] 0.0, 128
        %1635 = vxpose.xlu0.b32.cont [11/16] 0.0, 128
        %1636 = vxpose.xlu0.b32.cont [12/16] 0.0, 128
        %1637 = vxpose.xlu0.b32.cont [13/16] 0.0, 128
        %1638 = vxpose.xlu0.b32.cont [14/16] 0.0, 128
        %1639 = vxpose.xlu0.b32.cont [15/16] 0.0, 128
        %1640 = vxpose.xlu0.b32.end [16/16] 0.0, 128
        %v1641 = vpop.trf.xlu0
        %v1642 = vpop.trf.xlu0
        %v1643 = vpop.trf.xlu0
        %v1644 = vpop.trf.xlu0
        %v1645 = vpop.trf.xlu0
        %v1646 = vpop.trf.xlu0
        %v1647 = vpop.trf.xlu0
        %v1648 = vpop.trf.xlu0
        %v1649 = vpop.trf.xlu0
        %v1650 = vpop.trf.xlu0
        %v1651 = vpop.trf.xlu0
        %v1652 = vpop.trf.xlu0
        %v1653 = vpop.trf.xlu0
        %v1654 = vpop.trf.xlu0
        %v1655 = vpop.trf.xlu0
        %v1656 = vpop.trf.xlu0
        %vm1657 = vcmask 27648
        %1658 = vst.msk [vmem:[%s373] sm:$0xf] %vm1657, %v1641
        %s1659 = sand.u32 %s252, 1
        %s1660 = scalar_lea.sflag [#allocation3], %s1659
        %s1661 = sand.u32 %s252, 1
        %s1662 = smul.addr %s1661, 4
        %s1663 = scalar_lea.vmem [#allocation2], %s1662
        // Predicated region
        $region61: #{tpu_custom_call.1} parent=59 // pred_check
          %p1664 = pneg %p262
        $region62: #{tpu_custom_call.1} parent=59 // pred_check_branch
          %1666 = sbr.rel (%p1664) target = $region64
        $region63: #{tpu_custom_call.1} parent=59 // pred_region
          %s1668 = ssub.s32 64, 64
          %1669 = vsyncadd %s1660, %s1668
          %s1670 = smul.addr %s24, 64
          %s1671 = scalar_lea.hbm %s10, %s1670
          %s1673 = sshll.u32 %s1663, 4
          %s1674 = int_to_ptr.vmem [resolvable:$true] %s1673
          %1676 = dma.vmem_to_hbm [thread:$0]  %s1674, 64, %s1671, %s1660
        $region64: #{tpu_custom_call.1} parent=59 // pred_fallthru
          _
      $region60: #{tpu_custom_call.1} parent=5 // pred_fallthru
        _
      %p1677 = scmp.le.s32.totalorder 2, %s19
      // Predicated region
      $region65: #{tpu_custom_call.1} parent=5 // pred_check
        %p1678 = pneg %p1677
      $region66: #{tpu_custom_call.1} parent=5 // pred_check_branch
        %1680 = sbr.rel (%p1678) target = $region68
      $region67: #{tpu_custom_call.1} parent=5 // pred_region
        %s1681 = ssub.s32 %s19, 2
        // Predicated region
        $region69: #{tpu_custom_call.1} parent=67 // pred_check
          %p1682 = pneg %p268
        $region70: #{tpu_custom_call.1} parent=67 // pred_check_branch
          %1684 = sbr.rel (%p1682) target = $region72
        $region71: #{tpu_custom_call.1} parent=67 // pred_region
          %s1685 = sand.u32 %s253, 1
          %s1686 = scalar_lea.sflag [#allocation3], %s1685
          %s1687 = sand.u32 %s253, 1
          %s1688 = smul.addr %s1687, 4
          %s1689 = scalar_lea.vmem [#allocation2], %s1688
          %1690 = dma.done %s1686, 64
        $region72: #{tpu_custom_call.1} parent=67 // pred_fallthru
          _
      $region68: #{tpu_custom_call.1} parent=5 // pred_fallthru
        _
    $region6: #{tpu_custom_call.1} parent=1 // loop_footer
      %s23 = sadd.s32 1, %s19
    $region7: #{tpu_custom_call.1} parent=1 // loop_footer_branch
      %18 = sbr.rel target = $region3
    $region8: #{tpu_custom_call.1} parent=1 // loop_exit
      _
    %1691 = vsyncpa [#allocation3], 1
    %s1692 = scalar_lea.sflag [#allocation3], 1
    %1693 = vsyncpa %s1692, 1

</llo_original>
